<compile_context>
chip_gen: v7x
topology: tpu7x:2x2x1
jax: 0.10.0
libtpu: 0.0.40
codegen_flags: <defaults>
</compile_context>

<pallas_src>
import functools

import jax
import jax.numpy as jnp
from jax.experimental import pallas as pl
from jax.experimental.pallas import tpu as pltpu


def _round_up(x, m):
    return (x + m - 1) // m * m


def rnng_kernel(x_ref, wih_ref, whh_ref, b_ref, h0_ref, c0_ref,
                wout_ref, bout_ref, out_ref, xg_ref, *, seq_len):
    """Statically unrolled LSTMCell recurrence + lane-dense output head.

    x_ref   : (Sp, D)  bf16  token embeddings (Sp = S padded to multiple of 8)
    wih_ref : (D, 4H)  bf16  input->gates weights, gate cols (i,f,o,g)
    whh_ref : (H, 4H)  bf16  hidden->gates weights, gate cols (i,f,o,g)
    b_ref   : (1, 4H)  f32   combined bias (b_ih + b_hh), gate cols (i,f,o,g)
    h0_ref  : (1, H)   f32   initial hidden
    c0_ref  : (1, H)   f32   initial cell
    wout_ref: (H, Op)  bf16  linear weights, O zero-padded to Op (mult. of 128)
    bout_ref: (1, Op)  f32   linear bias, zero-padded
    out_ref : (Sp, Op) f32   output (padded; sliced outside)
    xg_ref  : (Sp, 4H) f32   scratch, precomputed input-gate contributions
    """
    s_pad = x_ref.shape[0]
    H = h0_ref.shape[1]

    # Hot matmul #1: all timesteps' input-gate contributions in one bf16 MXU
    # matmul with f32 accumulation (bias folded in here, once).
    xg_ref[...] = (
        jnp.dot(x_ref[...], wih_ref[...], preferred_element_type=jnp.float32)
        + b_ref[...]
    )

    # Recurrence: fully unrolled (seq_len is small and static), so hidden
    # rows live in registers and no per-step masked stores hit VMEM.
    h = h0_ref[...].astype(jnp.bfloat16)   # bf16 feedback for the MXU
    c = c0_ref[...]                         # cell state kept in f32
    hs = []
    for t in range(seq_len):
        # Recurrent matmul (1,H)@(H,4H): bf16 operands, f32 accumulation.
        # TODO(synk): replace with weight-resident matmul_acc_lhs/matmul_pop.
        gates = xg_ref[t:t + 1, :] + jnp.dot(
            h, whh_ref[...], preferred_element_type=jnp.float32)
        # Gate cols are (i,f,o,g).  sigmoid(x) = 0.5*tanh(0.5*x)+0.5 -> one
        # EUP op per vreg for i/f/o (vs exp+recip), one tanh for g.
        sig = 0.5 * jnp.tanh(0.5 * gates[:, 0:3 * H]) + 0.5
        g_g = jnp.tanh(gates[:, 3 * H:4 * H])
        i_g = sig[:, 0:H]
        f_g = sig[:, H:2 * H]
        o_g = sig[:, 2 * H:3 * H]
        c = f_g * c + i_g * g_g
        h_f32 = o_g * jnp.tanh(c)
        h = h_f32.astype(jnp.bfloat16)      # bf16 drift negligible at small S
        hs.append(h_f32)

    # Assemble all hidden states in one block (padded rows are zeros; they are
    # sliced off outside), single cast, then one lane-dense head matmul whose
    # stores are unmasked full-width vst (Op is a multiple of 128).
    pad_rows = s_pad - seq_len
    if pad_rows > 0:
        hs.append(jnp.zeros((pad_rows, H), jnp.float32))
    h_all = jnp.concatenate(hs, axis=0).astype(jnp.bfloat16)   # (Sp, H)

    out_ref[...] = (
        jnp.dot(h_all, wout_ref[...], preferred_element_type=jnp.float32)
        + bout_ref[...]
    )


def pack_rnng_params(emb_table, w_ih, w_hh, b_ih, b_hh, w_lin, b_lin,
                     output_dim):
    """One-time parameter repacking (call at model-load time, NOT per step).

    Transpose, permute gate columns from PyTorch (i,f,g,o) to (i,f,o,g),
    zero-pad the output head to a lane-dense width, and cast MXU operands to
    bf16.  Keeping this out of the jitted forward removes per-call transpose/
    gather/pad/cast kernels over the full weight tensors.
    """
    hid = w_hh.shape[1]
    o_pad = _round_up(output_dim, 128)

    perm = jnp.concatenate([
        jnp.arange(0, hid), jnp.arange(hid, 2 * hid),
        jnp.arange(3 * hid, 4 * hid), jnp.arange(2 * hid, 3 * hid)])

    wih_t = w_ih.T[:, perm].astype(jnp.bfloat16)                 # (D, 4H)
    whh_t = w_hh.T[:, perm].astype(jnp.bfloat16)                 # (H, 4H)
    bias = (b_ih + b_hh)[perm].reshape(1, -1).astype(jnp.float32)  # (1, 4H)

    wout_t = jnp.zeros((hid, o_pad), jnp.float32)
    wout_t = wout_t.at[:, :output_dim].set(w_lin.T).astype(jnp.bfloat16)
    bout = jnp.zeros((1, o_pad), jnp.float32).at[:, :output_dim].set(b_lin)

    return {
        "emb": emb_table.astype(jnp.bfloat16),   # gather directly in bf16
        "wih": wih_t, "whh": whh_t, "b": bias,
        "wout": wout_t, "bout": bout,
    }


@functools.partial(jax.jit, static_argnames=("output_dim",))
def rnng_forward(tokens, h0, c0, packed, *, output_dim):
    """Jitted forward: embedding gather + pad, then one pallas_call."""
    seq_len = tokens.shape[0]
    hid = h0.shape[1]
    s_pad = _round_up(seq_len, 8)
    o_pad = packed["wout"].shape[1]

    # Embedding lookup (pure gather, bf16 table packed once), pad S to a
    # sublane multiple.  TODO(synk): fuse into the kernel via scalar-prefetch
    # for production vocab/D sizes.
    x = packed["emb"][tokens]                                   # (S, D) bf16
    x = jnp.pad(x, ((0, s_pad - seq_len), (0, 0)))

    vmem = pl.BlockSpec(memory_space=pltpu.MemorySpace.VMEM)

    out = pl.pallas_call(
        functools.partial(rnng_kernel, seq_len=seq_len),
        out_shape=jax.ShapeDtypeStruct((s_pad, o_pad), jnp.float32),
        in_specs=[vmem] * 8,
        out_specs=vmem,
        scratch_shapes=[
            pltpu.VMEM((s_pad, 4 * hid), jnp.float32),   # xg contributions
        ],
        compiler_params=pltpu.CompilerParams(
            # Explicit VMEM budget (whole problem is resident; demo needs
            # ~0.25 MiB).  Re-derive together with S-chunking for long
            # sequences (v7x 64 MiB physical, v5e 16 MiB scoped default).
            vmem_limit_bytes=8 * 1024 * 1024),
    )(x, packed["wih"], packed["whh"], packed["b"], h0, c0,
      packed["wout"], packed["bout"])
    return out[:seq_len, :output_dim]


def reference_forward(tokens, emb_table, w_ih, w_hh, b_ih, b_hh,
                      h0, c0, w_lin, b_lin):
    """Pure-JAX f32 reference mirroring the PyTorch forward (i,f,g,o order)."""
    x = emb_table[tokens]
    hid = h0.shape[1]
    h, c = h0, c0
    hs = []
    for t in range(tokens.shape[0]):
        xt = x[t:t + 1]                                 # (1, D)
        gates = xt @ w_ih.T + b_ih + h @ w_hh.T + b_hh
        i_g = jax.nn.sigmoid(gates[:, 0:hid])
        f_g = jax.nn.sigmoid(gates[:, hid:2 * hid])
        g_g = jnp.tanh(gates[:, 2 * hid:3 * hid])
        o_g = jax.nn.sigmoid(gates[:, 3 * hid:4 * hid])
        c = f_g * c + i_g * g_g
        h = o_g * jnp.tanh(c)
        hs.append(h)
    out = jnp.concatenate(hs, axis=0)
    return out @ w_lin.T + b_lin


if __name__ == "__main__":
    # Small, deterministic config consistent with the module's __init__.
    vocab_size = 10
    tok_emb_dim = 64     # module default 300, scaled down
    lstm_hid_dim = 128   # module default 256, scaled down; multiple of 128 so
                         # every gate slice is lane-aligned on the per-step
                         # critical path
    output_dim = 2
    seq_len = 8

    key = jax.random.PRNGKey(0)
    keys = jax.random.split(key, 10)

    tokens = jax.random.randint(keys[0], (seq_len,), 0, vocab_size)

    # Deterministic synthetic parameters (shapes match nn.Embedding,
    # nn.LSTMCell, nn.Linear).
    emb_table = jax.random.normal(keys[1], (vocab_size, tok_emb_dim), jnp.float32)
    bound = 1.0 / jnp.sqrt(jnp.float32(lstm_hid_dim))
    w_ih = jax.random.uniform(keys[2], (4 * lstm_hid_dim, tok_emb_dim),
                              jnp.float32, -bound, bound)
    w_hh = jax.random.uniform(keys[3], (4 * lstm_hid_dim, lstm_hid_dim),
                              jnp.float32, -bound, bound)
    b_ih = jax.random.uniform(keys[4], (4 * lstm_hid_dim,), jnp.float32,
                              -bound, bound)
    b_hh = jax.random.uniform(keys[5], (4 * lstm_hid_dim,), jnp.float32,
                              -bound, bound)
    # xavier-normal-style initial (h0, c0) from the forward pass, made
    # deterministic in-script.
    h0 = jax.random.normal(keys[6], (1, lstm_hid_dim), jnp.float32) * 0.1
    c0 = jax.random.normal(keys[7], (1, lstm_hid_dim), jnp.float32) * 0.1
    w_lin = jax.random.uniform(keys[8], (output_dim, lstm_hid_dim), jnp.float32,
                               -bound, bound)
    b_lin = jax.random.uniform(keys[9], (output_dim,), jnp.float32,
                               -bound, bound)

    # One-time parameter packing (kept out of the jitted forward).
    packed = pack_rnng_params(emb_table, w_ih, w_hh, b_ih, b_hh,
                              w_lin, b_lin, output_dim)
    packed = jax.tree_util.tree_map(jax.block_until_ready, packed)

    out = rnng_forward(tokens, h0, c0, packed, output_dim=output_dim)
    out = jax.block_until_ready(out)

    ref = reference_forward(tokens, emb_table, w_ih, w_hh, b_ih, b_hh,
                            h0, c0, w_lin, b_lin)
    assert out.shape == (seq_len, output_dim)
    # Tolerance loosened for bf16 weights/activations on the MXU path.
    assert jnp.allclose(out, ref, atol=2e-2, rtol=2e-2)
    print("KERNEL_OK")
</pallas_src>

<mosaic_0001>
module attributes {stable_mosaic.version = 11 : i64} {
  func.func @rnng_kernel(%arg0: memref<8x64xbf16, #tpu.memory_space<vmem>>, %arg1: memref<64x512xbf16, #tpu.memory_space<vmem>>, %arg2: memref<128x512xbf16, #tpu.memory_space<vmem>>, %arg3: memref<1x512xf32, #tpu.memory_space<vmem>>, %arg4: memref<1x128xf32, #tpu.memory_space<vmem>>, %arg5: memref<1x128xf32, #tpu.memory_space<vmem>>, %arg6: memref<128x128xbf16, #tpu.memory_space<vmem>>, %arg7: memref<1x128xf32, #tpu.memory_space<vmem>>, %arg8: memref<8x128xf32, #tpu.memory_space<vmem>>, %arg9: memref<8x512xf32, #tpu.memory_space<vmem>>) attributes {dimension_semantics = [], scalar_prefetch = 0 : i64, scratch_operands = 1 : i64, tpu.core_type = #tpu.core_type<tc>} {
    %c0 = arith.constant 0 : index
    %c0_0 = arith.constant 0 : index
    %0 = vector.load %arg0[%c0, %c0_0] : memref<8x64xbf16, #tpu.memory_space<vmem>>, vector<8x64xbf16>
    %c0_1 = arith.constant 0 : index
    %c0_2 = arith.constant 0 : index
    %1 = vector.load %arg1[%c0_1, %c0_2] : memref<64x512xbf16, #tpu.memory_space<vmem>>, vector<64x512xbf16>
    %cst = arith.constant dense<0.000000e+00> : vector<8x512xf32>
    %2 = tpu.matmul %0, %1, %cst {dimension_numbers = #tpu.dot_dimension_numbers<[1], [0], [0], [1], [0, 0, 1, 1], [], []>} : vector<8x64xbf16>, vector<64x512xbf16>, vector<8x512xf32> -> vector<8x512xf32>
    %c0_3 = arith.constant 0 : index
    %c0_4 = arith.constant 0 : index
    %3 = vector.load %arg3[%c0_3, %c0_4] : memref<1x512xf32, #tpu.memory_space<vmem>>, vector<1x512xf32>
    %4 = vector.broadcast %3 : vector<1x512xf32> to vector<8x512xf32>
    %5 = arith.addf %2, %4 : vector<8x512xf32>
    %c0_5 = arith.constant 0 : index
    %c0_6 = arith.constant 0 : index
    %6 = vector.load %arg9[%c0_5, %c0_6] : memref<8x512xf32, #tpu.memory_space<vmem>>, vector<8x512xf32>
    tpu.vector_store %arg9[%c0_5, %c0_6], %5 {strides = array<i32>} : memref<8x512xf32, #tpu.memory_space<vmem>>, vector<8x512xf32>,
    %c0_7 = arith.constant 0 : index
    %c0_8 = arith.constant 0 : index
    %7 = vector.load %arg4[%c0_7, %c0_8] : memref<1x128xf32, #tpu.memory_space<vmem>>, vector<1x128xf32>
    %8 = arith.truncf %7 : vector<1x128xf32> to vector<1x128xbf16>
    %c0_9 = arith.constant 0 : index
    %c0_10 = arith.constant 0 : index
    %9 = vector.load %arg5[%c0_9, %c0_10] : memref<1x128xf32, #tpu.memory_space<vmem>>, vector<1x128xf32>
    %c0_11 = arith.constant 0 : index
    %c0_12 = arith.constant 0 : index
    %10 = vector.load %arg9[%c0_11, %c0_12] : memref<8x512xf32, #tpu.memory_space<vmem>>, vector<1x512xf32>
    %c0_13 = arith.constant 0 : index
    %c0_14 = arith.constant 0 : index
    %11 = vector.load %arg2[%c0_13, %c0_14] : memref<128x512xbf16, #tpu.memory_space<vmem>>, vector<128x512xbf16>
    %cst_15 = arith.constant dense<0.000000e+00> : vector<1x512xf32>
    %12 = tpu.matmul %8, %11, %cst_15 {dimension_numbers = #tpu.dot_dimension_numbers<[1], [0], [0], [1], [0, 0, 1, 1], [], []>} : vector<1x128xbf16>, vector<128x512xbf16>, vector<1x512xf32> -> vector<1x512xf32>
    %13 = arith.addf %10, %12 : vector<1x512xf32>
    %14 = vector.extract_strided_slice %13 {offsets = [0, 0], sizes = [1, 384], strides = [1, 1]} : vector<1x512xf32> to vector<1x384xf32>
    %cst_16 = arith.constant 5.000000e-01 : f32
    %15 = vector.broadcast %cst_16 : f32 to vector<1x384xf32>
    %16 = arith.mulf %15, %14 : vector<1x384xf32>
    %17 = math.tanh %16 : vector<1x384xf32>
    %cst_17 = arith.constant 5.000000e-01 : f32
    %18 = vector.broadcast %cst_17 : f32 to vector<1x384xf32>
    %19 = arith.mulf %18, %17 : vector<1x384xf32>
    %cst_18 = arith.constant 5.000000e-01 : f32
    %20 = vector.broadcast %cst_18 : f32 to vector<1x384xf32>
    %21 = arith.addf %19, %20 : vector<1x384xf32>
    %22 = vector.extract_strided_slice %13 {offsets = [0, 384], sizes = [1, 128], strides = [1, 1]} : vector<1x512xf32> to vector<1x128xf32>
    %23 = math.tanh %22 : vector<1x128xf32>
    %24 = vector.extract_strided_slice %21 {offsets = [0, 0], sizes = [1, 128], strides = [1, 1]} : vector<1x384xf32> to vector<1x128xf32>
    %25 = vector.extract_strided_slice %21 {offsets = [0, 128], sizes = [1, 128], strides = [1, 1]} : vector<1x384xf32> to vector<1x128xf32>
    %26 = vector.extract_strided_slice %21 {offsets = [0, 256], sizes = [1, 128], strides = [1, 1]} : vector<1x384xf32> to vector<1x128xf32>
    %27 = arith.mulf %25, %9 : vector<1x128xf32>
    %28 = arith.mulf %24, %23 : vector<1x128xf32>
    %29 = arith.addf %27, %28 : vector<1x128xf32>
    %30 = math.tanh %29 : vector<1x128xf32>
    %31 = arith.mulf %26, %30 : vector<1x128xf32>
    %32 = arith.truncf %31 : vector<1x128xf32> to vector<1x128xbf16>
    %c1 = arith.constant 1 : index
    %c0_19 = arith.constant 0 : index
    %33 = vector.load %arg9[%c1, %c0_19] : memref<8x512xf32, #tpu.memory_space<vmem>>, vector<1x512xf32>
    %c0_20 = arith.constant 0 : index
    %c0_21 = arith.constant 0 : index
    %34 = vector.load %arg2[%c0_20, %c0_21] : memref<128x512xbf16, #tpu.memory_space<vmem>>, vector<128x512xbf16>
    %cst_22 = arith.constant dense<0.000000e+00> : vector<1x512xf32>
    %35 = tpu.matmul %32, %34, %cst_22 {dimension_numbers = #tpu.dot_dimension_numbers<[1], [0], [0], [1], [0, 0, 1, 1], [], []>} : vector<1x128xbf16>, vector<128x512xbf16>, vector<1x512xf32> -> vector<1x512xf32>
    %36 = arith.addf %33, %35 : vector<1x512xf32>
    %37 = vector.extract_strided_slice %36 {offsets = [0, 0], sizes = [1, 384], strides = [1, 1]} : vector<1x512xf32> to vector<1x384xf32>
    %cst_23 = arith.constant 5.000000e-01 : f32
    %38 = vector.broadcast %cst_23 : f32 to vector<1x384xf32>
    %39 = arith.mulf %38, %37 : vector<1x384xf32>
    %40 = math.tanh %39 : vector<1x384xf32>
    %cst_24 = arith.constant 5.000000e-01 : f32
    %41 = vector.broadcast %cst_24 : f32 to vector<1x384xf32>
    %42 = arith.mulf %41, %40 : vector<1x384xf32>
    %cst_25 = arith.constant 5.000000e-01 : f32
    %43 = vector.broadcast %cst_25 : f32 to vector<1x384xf32>
    %44 = arith.addf %42, %43 : vector<1x384xf32>
    %45 = vector.extract_strided_slice %36 {offsets = [0, 384], sizes = [1, 128], strides = [1, 1]} : vector<1x512xf32> to vector<1x128xf32>
    %46 = math.tanh %45 : vector<1x128xf32>
    %47 = vector.extract_strided_slice %44 {offsets = [0, 0], sizes = [1, 128], strides = [1, 1]} : vector<1x384xf32> to vector<1x128xf32>
    %48 = vector.extract_strided_slice %44 {offsets = [0, 128], sizes = [1, 128], strides = [1, 1]} : vector<1x384xf32> to vector<1x128xf32>
    %49 = vector.extract_strided_slice %44 {offsets = [0, 256], sizes = [1, 128], strides = [1, 1]} : vector<1x384xf32> to vector<1x128xf32>
    %50 = arith.mulf %48, %29 : vector<1x128xf32>
    %51 = arith.mulf %47, %46 : vector<1x128xf32>
    %52 = arith.addf %50, %51 : vector<1x128xf32>
    %53 = math.tanh %52 : vector<1x128xf32>
    %54 = arith.mulf %49, %53 : vector<1x128xf32>
    %55 = arith.truncf %54 : vector<1x128xf32> to vector<1x128xbf16>
    %c2 = arith.constant 2 : index
    %c0_26 = arith.constant 0 : index
    %56 = vector.load %arg9[%c2, %c0_26] : memref<8x512xf32, #tpu.memory_space<vmem>>, vector<1x512xf32>
    %c0_27 = arith.constant 0 : index
    %c0_28 = arith.constant 0 : index
    %57 = vector.load %arg2[%c0_27, %c0_28] : memref<128x512xbf16, #tpu.memory_space<vmem>>, vector<128x512xbf16>
    %cst_29 = arith.constant dense<0.000000e+00> : vector<1x512xf32>
    %58 = tpu.matmul %55, %57, %cst_29 {dimension_numbers = #tpu.dot_dimension_numbers<[1], [0], [0], [1], [0, 0, 1, 1], [], []>} : vector<1x128xbf16>, vector<128x512xbf16>, vector<1x512xf32> -> vector<1x512xf32>
    %59 = arith.addf %56, %58 : vector<1x512xf32>
    %60 = vector.extract_strided_slice %59 {offsets = [0, 0], sizes = [1, 384], strides = [1, 1]} : vector<1x512xf32> to vector<1x384xf32>
    %cst_30 = arith.constant 5.000000e-01 : f32
    %61 = vector.broadcast %cst_30 : f32 to vector<1x384xf32>
    %62 = arith.mulf %61, %60 : vector<1x384xf32>
    %63 = math.tanh %62 : vector<1x384xf32>
    %cst_31 = arith.constant 5.000000e-01 : f32
    %64 = vector.broadcast %cst_31 : f32 to vector<1x384xf32>
    %65 = arith.mulf %64, %63 : vector<1x384xf32>
    %cst_32 = arith.constant 5.000000e-01 : f32
    %66 = vector.broadcast %cst_32 : f32 to vector<1x384xf32>
    %67 = arith.addf %65, %66 : vector<1x384xf32>
    %68 = vector.extract_strided_slice %59 {offsets = [0, 384], sizes = [1, 128], strides = [1, 1]} : vector<1x512xf32> to vector<1x128xf32>
    %69 = math.tanh %68 : vector<1x128xf32>
    %70 = vector.extract_strided_slice %67 {offsets = [0, 0], sizes = [1, 128], strides = [1, 1]} : vector<1x384xf32> to vector<1x128xf32>
    %71 = vector.extract_strided_slice %67 {offsets = [0, 128], sizes = [1, 128], strides = [1, 1]} : vector<1x384xf32> to vector<1x128xf32>
    %72 = vector.extract_strided_slice %67 {offsets = [0, 256], sizes = [1, 128], strides = [1, 1]} : vector<1x384xf32> to vector<1x128xf32>
    %73 = arith.mulf %71, %52 : vector<1x128xf32>
    %74 = arith.mulf %70, %69 : vector<1x128xf32>
    %75 = arith.addf %73, %74 : vector<1x128xf32>
    %76 = math.tanh %75 : vector<1x128xf32>
    %77 = arith.mulf %72, %76 : vector<1x128xf32>
    %78 = arith.truncf %77 : vector<1x128xf32> to vector<1x128xbf16>
    %c3 = arith.constant 3 : index
    %c0_33 = arith.constant 0 : index
    %79 = vector.load %arg9[%c3, %c0_33] : memref<8x512xf32, #tpu.memory_space<vmem>>, vector<1x512xf32>
    %c0_34 = arith.constant 0 : index
    %c0_35 = arith.constant 0 : index
    %80 = vector.load %arg2[%c0_34, %c0_35] : memref<128x512xbf16, #tpu.memory_space<vmem>>, vector<128x512xbf16>
    %cst_36 = arith.constant dense<0.000000e+00> : vector<1x512xf32>
    %81 = tpu.matmul %78, %80, %cst_36 {dimension_numbers = #tpu.dot_dimension_numbers<[1], [0], [0], [1], [0, 0, 1, 1], [], []>} : vector<1x128xbf16>, vector<128x512xbf16>, vector<1x512xf32> -> vector<1x512xf32>
    %82 = arith.addf %79, %81 : vector<1x512xf32>
    %83 = vector.extract_strided_slice %82 {offsets = [0, 0], sizes = [1, 384], strides = [1, 1]} : vector<1x512xf32> to vector<1x384xf32>
    %cst_37 = arith.constant 5.000000e-01 : f32
    %84 = vector.broadcast %cst_37 : f32 to vector<1x384xf32>
    %85 = arith.mulf %84, %83 : vector<1x384xf32>
    %86 = math.tanh %85 : vector<1x384xf32>
    %cst_38 = arith.constant 5.000000e-01 : f32
    %87 = vector.broadcast %cst_38 : f32 to vector<1x384xf32>
    %88 = arith.mulf %87, %86 : vector<1x384xf32>
    %cst_39 = arith.constant 5.000000e-01 : f32
    %89 = vector.broadcast %cst_39 : f32 to vector<1x384xf32>
    %90 = arith.addf %88, %89 : vector<1x384xf32>
    %91 = vector.extract_strided_slice %82 {offsets = [0, 384], sizes = [1, 128], strides = [1, 1]} : vector<1x512xf32> to vector<1x128xf32>
    %92 = math.tanh %91 : vector<1x128xf32>
    %93 = vector.extract_strided_slice %90 {offsets = [0, 0], sizes = [1, 128], strides = [1, 1]} : vector<1x384xf32> to vector<1x128xf32>
    %94 = vector.extract_strided_slice %90 {offsets = [0, 128], sizes = [1, 128], strides = [1, 1]} : vector<1x384xf32> to vector<1x128xf32>
    %95 = vector.extract_strided_slice %90 {offsets = [0, 256], sizes = [1, 128], strides = [1, 1]} : vector<1x384xf32> to vector<1x128xf32>
    %96 = arith.mulf %94, %75 : vector<1x128xf32>
    %97 = arith.mulf %93, %92 : vector<1x128xf32>
    %98 = arith.addf %96, %97 : vector<1x128xf32>
    %99 = math.tanh %98 : vector<1x128xf32>
    %100 = arith.mulf %95, %99 : vector<1x128xf32>
    %101 = arith.truncf %100 : vector<1x128xf32> to vector<1x128xbf16>
    %c4 = arith.constant 4 : index
    %c0_40 = arith.constant 0 : index
    %102 = vector.load %arg9[%c4, %c0_40] : memref<8x512xf32, #tpu.memory_space<vmem>>, vector<1x512xf32>
    %c0_41 = arith.constant 0 : index
    %c0_42 = arith.constant 0 : index
    %103 = vector.load %arg2[%c0_41, %c0_42] : memref<128x512xbf16, #tpu.memory_space<vmem>>, vector<128x512xbf16>
    %cst_43 = arith.constant dense<0.000000e+00> : vector<1x512xf32>
    %104 = tpu.matmul %101, %103, %cst_43 {dimension_numbers = #tpu.dot_dimension_numbers<[1], [0], [0], [1], [0, 0, 1, 1], [], []>} : vector<1x128xbf16>, vector<128x512xbf16>, vector<1x512xf32> -> vector<1x512xf32>
    %105 = arith.addf %102, %104 : vector<1x512xf32>
    %106 = vector.extract_strided_slice %105 {offsets = [0, 0], sizes = [1, 384], strides = [1, 1]} : vector<1x512xf32> to vector<1x384xf32>
    %cst_44 = arith.constant 5.000000e-01 : f32
    %107 = vector.broadcast %cst_44 : f32 to vector<1x384xf32>
    %108 = arith.mulf %107, %106 : vector<1x384xf32>
    %109 = math.tanh %108 : vector<1x384xf32>
    %cst_45 = arith.constant 5.000000e-01 : f32
    %110 = vector.broadcast %cst_45 : f32 to vector<1x384xf32>
    %111 = arith.mulf %110, %109 : vector<1x384xf32>
    %cst_46 = arith.constant 5.000000e-01 : f32
    %112 = vector.broadcast %cst_46 : f32 to vector<1x384xf32>
    %113 = arith.addf %111, %112 : vector<1x384xf32>
    %114 = vector.extract_strided_slice %105 {offsets = [0, 384], sizes = [1, 128], strides = [1, 1]} : vector<1x512xf32> to vector<1x128xf32>
    %115 = math.tanh %114 : vector<1x128xf32>
    %116 = vector.extract_strided_slice %113 {offsets = [0, 0], sizes = [1, 128], strides = [1, 1]} : vector<1x384xf32> to vector<1x128xf32>
    %117 = vector.extract_strided_slice %113 {offsets = [0, 128], sizes = [1, 128], strides = [1, 1]} : vector<1x384xf32> to vector<1x128xf32>
    %118 = vector.extract_strided_slice %113 {offsets = [0, 256], sizes = [1, 128], strides = [1, 1]} : vector<1x384xf32> to vector<1x128xf32>
    %119 = arith.mulf %117, %98 : vector<1x128xf32>
    %120 = arith.mulf %116, %115 : vector<1x128xf32>
    %121 = arith.addf %119, %120 : vector<1x128xf32>
    %122 = math.tanh %121 : vector<1x128xf32>
    %123 = arith.mulf %118, %122 : vector<1x128xf32>
    %124 = arith.truncf %123 : vector<1x128xf32> to vector<1x128xbf16>
    %c5 = arith.constant 5 : index
    %c0_47 = arith.constant 0 : index
    %125 = vector.load %arg9[%c5, %c0_47] : memref<8x512xf32, #tpu.memory_space<vmem>>, vector<1x512xf32>
    %c0_48 = arith.constant 0 : index
    %c0_49 = arith.constant 0 : index
    %126 = vector.load %arg2[%c0_48, %c0_49] : memref<128x512xbf16, #tpu.memory_space<vmem>>, vector<128x512xbf16>
    %cst_50 = arith.constant dense<0.000000e+00> : vector<1x512xf32>
    %127 = tpu.matmul %124, %126, %cst_50 {dimension_numbers = #tpu.dot_dimension_numbers<[1], [0], [0], [1], [0, 0, 1, 1], [], []>} : vector<1x128xbf16>, vector<128x512xbf16>, vector<1x512xf32> -> vector<1x512xf32>
    %128 = arith.addf %125, %127 : vector<1x512xf32>
    %129 = vector.extract_strided_slice %128 {offsets = [0, 0], sizes = [1, 384], strides = [1, 1]} : vector<1x512xf32> to vector<1x384xf32>
    %cst_51 = arith.constant 5.000000e-01 : f32
    %130 = vector.broadcast %cst_51 : f32 to vector<1x384xf32>
    %131 = arith.mulf %130, %129 : vector<1x384xf32>
    %132 = math.tanh %131 : vector<1x384xf32>
    %cst_52 = arith.constant 5.000000e-01 : f32
    %133 = vector.broadcast %cst_52 : f32 to vector<1x384xf32>
    %134 = arith.mulf %133, %132 : vector<1x384xf32>
    %cst_53 = arith.constant 5.000000e-01 : f32
    %135 = vector.broadcast %cst_53 : f32 to vector<1x384xf32>
    %136 = arith.addf %134, %135 : vector<1x384xf32>
    %137 = vector.extract_strided_slice %128 {offsets = [0, 384], sizes = [1, 128], strides = [1, 1]} : vector<1x512xf32> to vector<1x128xf32>
    %138 = math.tanh %137 : vector<1x128xf32>
    %139 = vector.extract_strided_slice %136 {offsets = [0, 0], sizes = [1, 128], strides = [1, 1]} : vector<1x384xf32> to vector<1x128xf32>
    %140 = vector.extract_strided_slice %136 {offsets = [0, 128], sizes = [1, 128], strides = [1, 1]} : vector<1x384xf32> to vector<1x128xf32>
    %141 = vector.extract_strided_slice %136 {offsets = [0, 256], sizes = [1, 128], strides = [1, 1]} : vector<1x384xf32> to vector<1x128xf32>
    %142 = arith.mulf %140, %121 : vector<1x128xf32>
    %143 = arith.mulf %139, %138 : vector<1x128xf32>
    %144 = arith.addf %142, %143 : vector<1x128xf32>
    %145 = math.tanh %144 : vector<1x128xf32>
    %146 = arith.mulf %141, %145 : vector<1x128xf32>
    %147 = arith.truncf %146 : vector<1x128xf32> to vector<1x128xbf16>
    %c6 = arith.constant 6 : index
    %c0_54 = arith.constant 0 : index
    %148 = vector.load %arg9[%c6, %c0_54] : memref<8x512xf32, #tpu.memory_space<vmem>>, vector<1x512xf32>
    %c0_55 = arith.constant 0 : index
    %c0_56 = arith.constant 0 : index
    %149 = vector.load %arg2[%c0_55, %c0_56] : memref<128x512xbf16, #tpu.memory_space<vmem>>, vector<128x512xbf16>
    %cst_57 = arith.constant dense<0.000000e+00> : vector<1x512xf32>
    %150 = tpu.matmul %147, %149, %cst_57 {dimension_numbers = #tpu.dot_dimension_numbers<[1], [0], [0], [1], [0, 0, 1, 1], [], []>} : vector<1x128xbf16>, vector<128x512xbf16>, vector<1x512xf32> -> vector<1x512xf32>
    %151 = arith.addf %148, %150 : vector<1x512xf32>
    %152 = vector.extract_strided_slice %151 {offsets = [0, 0], sizes = [1, 384], strides = [1, 1]} : vector<1x512xf32> to vector<1x384xf32>
    %cst_58 = arith.constant 5.000000e-01 : f32
    %153 = vector.broadcast %cst_58 : f32 to vector<1x384xf32>
    %154 = arith.mulf %153, %152 : vector<1x384xf32>
    %155 = math.tanh %154 : vector<1x384xf32>
    %cst_59 = arith.constant 5.000000e-01 : f32
    %156 = vector.broadcast %cst_59 : f32 to vector<1x384xf32>
    %157 = arith.mulf %156, %155 : vector<1x384xf32>
    %cst_60 = arith.constant 5.000000e-01 : f32
    %158 = vector.broadcast %cst_60 : f32 to vector<1x384xf32>
    %159 = arith.addf %157, %158 : vector<1x384xf32>
    %160 = vector.extract_strided_slice %151 {offsets = [0, 384], sizes = [1, 128], strides = [1, 1]} : vector<1x512xf32> to vector<1x128xf32>
    %161 = math.tanh %160 : vector<1x128xf32>
    %162 = vector.extract_strided_slice %159 {offsets = [0, 0], sizes = [1, 128], strides = [1, 1]} : vector<1x384xf32> to vector<1x128xf32>
    %163 = vector.extract_strided_slice %159 {offsets = [0, 128], sizes = [1, 128], strides = [1, 1]} : vector<1x384xf32> to vector<1x128xf32>
    %164 = vector.extract_strided_slice %159 {offsets = [0, 256], sizes = [1, 128], strides = [1, 1]} : vector<1x384xf32> to vector<1x128xf32>
    %165 = arith.mulf %163, %144 : vector<1x128xf32>
    %166 = arith.mulf %162, %161 : vector<1x128xf32>
    %167 = arith.addf %165, %166 : vector<1x128xf32>
    %168 = math.tanh %167 : vector<1x128xf32>
    %169 = arith.mulf %164, %168 : vector<1x128xf32>
    %170 = arith.truncf %169 : vector<1x128xf32> to vector<1x128xbf16>
    %c7 = arith.constant 7 : index
    %c0_61 = arith.constant 0 : index
    %171 = vector.load %arg9[%c7, %c0_61] : memref<8x512xf32, #tpu.memory_space<vmem>>, vector<1x512xf32>
    %c0_62 = arith.constant 0 : index
    %c0_63 = arith.constant 0 : index
    %172 = vector.load %arg2[%c0_62, %c0_63] : memref<128x512xbf16, #tpu.memory_space<vmem>>, vector<128x512xbf16>
    %cst_64 = arith.constant dense<0.000000e+00> : vector<1x512xf32>
    %173 = tpu.matmul %170, %172, %cst_64 {dimension_numbers = #tpu.dot_dimension_numbers<[1], [0], [0], [1], [0, 0, 1, 1], [], []>} : vector<1x128xbf16>, vector<128x512xbf16>, vector<1x512xf32> -> vector<1x512xf32>
    %174 = arith.addf %171, %173 : vector<1x512xf32>
    %175 = vector.extract_strided_slice %174 {offsets = [0, 0], sizes = [1, 384], strides = [1, 1]} : vector<1x512xf32> to vector<1x384xf32>
    %cst_65 = arith.constant 5.000000e-01 : f32
    %176 = vector.broadcast %cst_65 : f32 to vector<1x384xf32>
    %177 = arith.mulf %176, %175 : vector<1x384xf32>
    %178 = math.tanh %177 : vector<1x384xf32>
    %cst_66 = arith.constant 5.000000e-01 : f32
    %179 = vector.broadcast %cst_66 : f32 to vector<1x384xf32>
    %180 = arith.mulf %179, %178 : vector<1x384xf32>
    %cst_67 = arith.constant 5.000000e-01 : f32
    %181 = vector.broadcast %cst_67 : f32 to vector<1x384xf32>
    %182 = arith.addf %180, %181 : vector<1x384xf32>
    %183 = vector.extract_strided_slice %174 {offsets = [0, 384], sizes = [1, 128], strides = [1, 1]} : vector<1x512xf32> to vector<1x128xf32>
    %184 = math.tanh %183 : vector<1x128xf32>
    %185 = vector.extract_strided_slice %182 {offsets = [0, 0], sizes = [1, 128], strides = [1, 1]} : vector<1x384xf32> to vector<1x128xf32>
    %186 = vector.extract_strided_slice %182 {offsets = [0, 128], sizes = [1, 128], strides = [1, 1]} : vector<1x384xf32> to vector<1x128xf32>
    %187 = vector.extract_strided_slice %182 {offsets = [0, 256], sizes = [1, 128], strides = [1, 1]} : vector<1x384xf32> to vector<1x128xf32>
    %188 = arith.mulf %186, %167 : vector<1x128xf32>
    %189 = arith.mulf %185, %184 : vector<1x128xf32>
    %190 = arith.addf %188, %189 : vector<1x128xf32>
    %191 = math.tanh %190 : vector<1x128xf32>
    %192 = arith.mulf %187, %191 : vector<1x128xf32>
    %193 = tpu.concatenate %31, %54, %77, %100, %123, %146, %169, %192 in 0 : vector<1x128xf32>, vector<1x128xf32>, vector<1x128xf32>, vector<1x128xf32>, vector<1x128xf32>, vector<1x128xf32>, vector<1x128xf32>, vector<1x128xf32> -> vector<8x128xf32>
    %194 = arith.truncf %193 : vector<8x128xf32> to vector<8x128xbf16>
    %c0_68 = arith.constant 0 : index
    %c0_69 = arith.constant 0 : index
    %195 = vector.load %arg6[%c0_68, %c0_69] : memref<128x128xbf16, #tpu.memory_space<vmem>>, vector<128x128xbf16>
    %cst_70 = arith.constant dense<0.000000e+00> : vector<8x128xf32>
    %196 = tpu.matmul %194, %195, %cst_70 {dimension_numbers = #tpu.dot_dimension_numbers<[1], [0], [0], [1], [0, 0, 1, 1], [], []>} : vector<8x128xbf16>, vector<128x128xbf16>, vector<8x128xf32> -> vector<8x128xf32>
    %c0_71 = arith.constant 0 : index
    %c0_72 = arith.constant 0 : index
    %197 = vector.load %arg7[%c0_71, %c0_72] : memref<1x128xf32, #tpu.memory_space<vmem>>, vector<1x128xf32>
    %198 = vector.broadcast %197 : vector<1x128xf32> to vector<8x128xf32>
    %199 = arith.addf %196, %198 : vector<8x128xf32>
    %c0_73 = arith.constant 0 : index
    %c0_74 = arith.constant 0 : index
    %200 = vector.load %arg8[%c0_73, %c0_74] : memref<8x128xf32, #tpu.memory_space<vmem>>, vector<8x128xf32>
    tpu.vector_store %arg8[%c0_73, %c0_74], %199 {strides = array<i32>} : memref<8x128xf32, #tpu.memory_space<vmem>>, vector<8x128xf32>,
    return
  }
}

</mosaic_0001>

<llo_original>
// kernel: rnng_forward.1
$region0: #{rnng_forward.1}
  #allocation0 [shape = 'u32[]', space=smem, size = 0x4, offset = 0x4, fixed_abs, tag = 'smem constant byte address 0x4 - core index']
  #allocation1 [shape = 'u32[144,128]{1,0:T(1,128)}', space=vmem, size = 0x12000, scoped, tag = 'internal scratch']
  #allocation2 [shape = 'f32[8,512]{1,0:T(8,128)}', space=vmem, size = 0x4000, scoped, tag = 'scratch operand']
  %s0 = inlined_call_operand.vmem [shape: bf16[8,64], index: 0, kind: input, shape index: {}]
  %s1 = inlined_call_operand.hbm [shape: bf16[64,512], index: 1, kind: input, shape index: {}]
  %s2 = inlined_call_operand.hbm [shape: bf16[128,512], index: 2, kind: input, shape index: {}]
  %s3 = inlined_call_operand.vmem [shape: f32[1,512], index: 3, kind: input, shape index: {}]
  %s4 = inlined_call_operand.vmem [shape: f32[1,128], index: 4, kind: input, shape index: {}]
  %s5 = inlined_call_operand.vmem [shape: f32[1,128], index: 5, kind: input, shape index: {}]
  %s6 = inlined_call_operand.vmem [shape: bf16[128,128], index: 6, kind: input, shape index: {}]
  %s7 = inlined_call_operand.vmem [shape: f32[1,128], index: 7, kind: input, shape index: {}]
  %s8 = inlined_call_operand.vmem [shape: f32[8,128], index: 8, kind: output, shape index: {}]
  %s9 = sld [smem:[#allocation0]]
  $region50: #{rnng_forward.1} parent=0
    _
  %s11 = ssub.s32 1, %s9
  %s12 = scalar_select 0, %s11, %s9
  $region1: #{rnng_forward.1} parent=0
    #allocation3 [shape = 'u8[65536]{0}', space=vmem, size = 0x10000, scoped, tag = 'input window, operand 1, single buffered']
    #allocation4 [shape = 's32[1]{0}', space=sflag, size = 0x4, scoped, tag = 'scoped memory for rnng_forward.1']
    #allocation5 [shape = 'u8[131072]{0}', space=vmem, size = 0x20000, scoped, tag = 'input window, operand 2, single buffered']
    #allocation6 [shape = 's32[1]{0}', space=sflag, size = 0x4, scoped, tag = 'scoped memory for rnng_forward.1']
    %13 = vsyncpa [#allocation4], 0
    %14 = vsyncpa [#allocation6], 0
    // Predicated region
    $region2: #{rnng_forward.1} parent=1 // pred_check
      _
    $region3: #{rnng_forward.1} parent=1 // pred_check_branch
      %16 = sbr.rel (0) target = $region5
    $region4: #{rnng_forward.1} parent=1 // pred_region
      _
    $region5: #{rnng_forward.1} parent=1 // pred_fallthru
      _
    // Predicated region
    $region6: #{rnng_forward.1} parent=1 // pred_check
      _
    $region7: #{rnng_forward.1} parent=1 // pred_check_branch
      %18 = sbr.rel (0) target = $region9
    $region8: #{rnng_forward.1} parent=1 // pred_region
      %s20 = ssub.s32 2048, 2048
      %21 = vsyncadd [#allocation4], %s20
      %s22 = sshll.u32 [#allocation3], 4
      %s23 = int_to_ptr.vmem [resolvable:$true] %s22
      %28 = dma.hbm_to_vmem [thread:$0]  %s1, 2048, %s23, [#allocation4], 256, 256, 16
    $region9: #{rnng_forward.1} parent=1 // pred_fallthru
      _
    // Predicated region
    $region10: #{rnng_forward.1} parent=1 // pred_check
      _
    $region11: #{rnng_forward.1} parent=1 // pred_check_branch
      %30 = sbr.rel (0) target = $region13
    $region12: #{rnng_forward.1} parent=1 // pred_region
      %s32 = ssub.s32 4096, 4096
      %33 = vsyncadd [#allocation6], %s32
      %s34 = sshll.u32 [#allocation5], 4
      %s35 = int_to_ptr.vmem [resolvable:$true] %s34
      %40 = dma.hbm_to_vmem [thread:$0]  %s2, 4096, %s35, [#allocation6], 256, 256, 16
    $region13: #{rnng_forward.1} parent=1 // pred_fallthru
      _
    // Predicated region
    $region14: #{rnng_forward.1} parent=1 // pred_check
      _
    $region15: #{rnng_forward.1} parent=1 // pred_check_branch
      %42 = sbr.rel (0) target = $region17
    $region16: #{rnng_forward.1} parent=1 // pred_region
      _
    $region17: #{rnng_forward.1} parent=1 // pred_fallthru
      _
    // Predicated region
    $region18: #{rnng_forward.1} parent=1 // pred_check
      _
    $region19: #{rnng_forward.1} parent=1 // pred_check_branch
      %44 = sbr.rel (0) target = $region21
    $region20: #{rnng_forward.1} parent=1 // pred_region
      _
    $region21: #{rnng_forward.1} parent=1 // pred_fallthru
      _
    // Predicated region
    $region22: #{rnng_forward.1} parent=1 // pred_check
      _
    $region23: #{rnng_forward.1} parent=1 // pred_check_branch
      %46 = sbr.rel (0) target = $region25
    $region24: #{rnng_forward.1} parent=1 // pred_region
      _
    $region25: #{rnng_forward.1} parent=1 // pred_fallthru
      _
    // Predicated region
    $region26: #{rnng_forward.1} parent=1 // pred_check
      _
    $region27: #{rnng_forward.1} parent=1 // pred_check_branch
      %48 = sbr.rel (0) target = $region29
    $region28: #{rnng_forward.1} parent=1 // pred_region
      _
    $region29: #{rnng_forward.1} parent=1 // pred_fallthru
      _
    // Predicated region
    $region30: #{rnng_forward.1} parent=1 // pred_check
      _
    $region31: #{rnng_forward.1} parent=1 // pred_check_branch
      %50 = sbr.rel (0) target = $region33
    $region32: #{rnng_forward.1} parent=1 // pred_region
      _
    $region33: #{rnng_forward.1} parent=1 // pred_fallthru
      _
    // Predicated region
    $region34: #{rnng_forward.1} parent=1 // pred_check
      _
    $region35: #{rnng_forward.1} parent=1 // pred_check_branch
      %52 = sbr.rel (0) target = $region37
    $region36: #{rnng_forward.1} parent=1 // pred_region
      %53 = dma.done [#allocation4], 2048
    $region37: #{rnng_forward.1} parent=1 // pred_fallthru
      _
    // Predicated region
    $region38: #{rnng_forward.1} parent=1 // pred_check
      _
    $region39: #{rnng_forward.1} parent=1 // pred_check_branch
      %55 = sbr.rel (0) target = $region41
    $region40: #{rnng_forward.1} parent=1 // pred_region
      %56 = dma.done [#allocation6], 4096
    $region41: #{rnng_forward.1} parent=1 // pred_fallthru
      _
    %v58 = vld [vmem:[%s0] sm:$0xf]
    %v59 = vld [vmem:[#allocation3] sm:$0xff]
    %v60 = vld [vmem:[#allocation3 + $0x8] sm:$0xff]
    %v61 = vld [vmem:[#allocation3 + $0x10] sm:$0xff]
    %v62 = vld [vmem:[#allocation3 + $0x18] sm:$0xff]
    %v63 = vld [vmem:[#allocation3 + $0x20] sm:$0xff]
    %v64 = vld [vmem:[#allocation3 + $0x28] sm:$0xff]
    %v65 = vld [vmem:[#allocation3 + $0x30] sm:$0xff]
    %v66 = vld [vmem:[#allocation3 + $0x38] sm:$0xff]
    %v67 = vld [vmem:[#allocation3 + $0x40] sm:$0xff]
    %v68 = vld [vmem:[#allocation3 + $0x48] sm:$0xff]
    %v69 = vld [vmem:[#allocation3 + $0x50] sm:$0xff]
    %v70 = vld [vmem:[#allocation3 + $0x58] sm:$0xff]
    %v71 = vld [vmem:[#allocation3 + $0x60] sm:$0xff]
    %v72 = vld [vmem:[#allocation3 + $0x68] sm:$0xff]
    %v73 = vld [vmem:[#allocation3 + $0x70] sm:$0xff]
    %v74 = vld [vmem:[#allocation3 + $0x78] sm:$0xff]
    %v75 = vld [vmem:[%s3] sm:$0xf]
    %v77 = vlaneseq
    %v78 = vshrl.u32 %v77, 7
    %v79 = vsub.s32 0, %v78
    %v80 = vrot.slane %v75, %v79
    %v81 = vlaneseq
    %v82 = vshrl.u32 %v81, 7
    %v83 = vsub.s32 1, %v82
    %v84 = vrot.slane %v75, %v83
    %v85 = vlaneseq
    %v86 = vshrl.u32 %v85, 7
    %v87 = vsub.s32 2, %v86
    %v88 = vrot.slane %v75, %v87
    %v89 = vlaneseq
    %v90 = vshrl.u32 %v89, 7
    %v91 = vsub.s32 3, %v90
    %v92 = vrot.slane %v75, %v91
    %v113 = vunpack.c.l.b16 %v59
    %v114 = vunpack.c.h.b16 %v59
    %v115 = vunpack.c.l.b16 %v60
    %v116 = vunpack.c.h.b16 %v60
    %v117 = vunpack.c.l.b16 %v61
    %v118 = vunpack.c.h.b16 %v61
    %v119 = vunpack.c.l.b16 %v62
    %v120 = vunpack.c.h.b16 %v62
    %v121 = vunpack.c.l.b16 %v63
    %v122 = vunpack.c.h.b16 %v63
    %v123 = vunpack.c.l.b16 %v64
    %v124 = vunpack.c.h.b16 %v64
    %v125 = vunpack.c.l.b16 %v65
    %v126 = vunpack.c.h.b16 %v65
    %v127 = vunpack.c.l.b16 %v66
    %v128 = vunpack.c.h.b16 %v66
    %v129 = vunpack.c.l.b16 %v67
    %v130 = vunpack.c.h.b16 %v67
    %v131 = vunpack.c.l.b16 %v68
    %v132 = vunpack.c.h.b16 %v68
    %v133 = vunpack.c.l.b16 %v69
    %v134 = vunpack.c.h.b16 %v69
    %v135 = vunpack.c.l.b16 %v70
    %v136 = vunpack.c.h.b16 %v70
    %v137 = vunpack.c.l.b16 %v71
    %v138 = vunpack.c.h.b16 %v71
    %v139 = vunpack.c.l.b16 %v72
    %v140 = vunpack.c.h.b16 %v72
    %v141 = vunpack.c.l.b16 %v73
    %v142 = vunpack.c.h.b16 %v73
    %v143 = vunpack.c.l.b16 %v74
    %v144 = vunpack.c.h.b16 %v74
    %v145 = vpack.c.b16 %v117, %v113
    %v146 = vpack.c.b16 %v118, %v114
    %v147 = vpack.c.b16 %v119, %v115
    %v148 = vpack.c.b16 %v120, %v116
    %v149 = vpack.c.b16 %v125, %v121
    %v150 = vpack.c.b16 %v126, %v122
    %v151 = vpack.c.b16 %v127, %v123
    %v152 = vpack.c.b16 %v128, %v124
    %v153 = vpack.c.b16 %v133, %v129
    %v154 = vpack.c.b16 %v134, %v130
    %v155 = vpack.c.b16 %v135, %v131
    %v156 = vpack.c.b16 %v136, %v132
    %v157 = vpack.c.b16 %v141, %v137
    %v158 = vpack.c.b16 %v142, %v138
    %v159 = vpack.c.b16 %v143, %v139
    %v160 = vpack.c.b16 %v144, %v140
    %vm177 = vcmask 523264
    %v179 = vsel %vm177, %v58, 0
    %181 = vmatprep.subr.bf16.mxu0 %v146
    %182 = vmatpush1.bf16.msra.mxu0 %v145
    %183 = vmatprep.subr.bf16.mxu0 %v150
    %184 = vmatpush1.bf16.msra.mxu0 %v149
    %185 = vmatprep.subr.bf16.mxu0 %v154
    %186 = vmatpush1.bf16.msra.mxu0 %v153
    %187 = vmatprep.subr.bf16.mxu0 %v158
    %188 = vmatpush1.bf16.msra.mxu0 %v157
    %189 = vmatprep.subr.bf16.mxu0 0
    %190 = vmatpush1.bf16.msra.mxu0 0
    %191 = vmatprep.subr.bf16.mxu0 0
    %192 = vmatpush1.bf16.msra.mxu0 0
    %193 = vmatprep.subr.bf16.mxu0 0
    %194 = vmatpush1.bf16.msra.mxu0 0
    %195 = vmatprep.subr.bf16.mxu0 0
    %196 = vmatpush1.bf16.msra.mxu0 0
    %197 = vmatprep.subr.bf16.mxu0 0
    %198 = vmatpush1.bf16.msra.mxu0 0
    %199 = vmatprep.subr.bf16.mxu0 0
    %200 = vmatpush1.bf16.msra.mxu0 0
    %201 = vmatprep.subr.bf16.mxu0 0
    %202 = vmatpush1.bf16.msra.mxu0 0
    %203 = vmatprep.subr.bf16.mxu0 0
    %204 = vmatpush1.bf16.msra.mxu0 0
    %205 = vmatprep.subr.bf16.mxu0 0
    %206 = vmatpush1.bf16.msra.mxu0 0
    %207 = vmatprep.subr.bf16.mxu0 0
    %208 = vmatpush1.bf16.msra.mxu0 0
    %209 = vmatprep.subr.bf16.mxu0 0
    %210 = vmatpush1.bf16.msra.mxu0 0
    %211 = vmatprep.subr.bf16.mxu0 0
    %212 = vmatpush1.bf16.msra.mxu0 0
    %213 = vmatprep.mubr.bf16.mxu0 0
    %214 = vmatmul.mubr.bf16.gmra.mrb[0].mxu0 %v179
    %v215 = vpop.f32.mrb[0].mxu0
    %v216 = vadd.f32 %v80, %v215
    %v217 = vpop.f32.mrb[0].mxu0
    %v218 = vadd.f32 %v84, %v217
    %v219 = vpop.f32.mrb[0].mxu0
    %v220 = vpop.f32.mrb[0].mxu0
    %221 = vdwg.mxu0
    %222 = vmatprep.subr.bf16.mxu0 %v148
    %223 = vmatpush1.bf16.msra.mxu0 %v147
    %224 = vmatprep.subr.bf16.mxu0 %v152
    %225 = vmatpush1.bf16.msra.mxu0 %v151
    %226 = vmatprep.subr.bf16.mxu0 %v156
    %227 = vmatpush1.bf16.msra.mxu0 %v155
    %228 = vmatprep.subr.bf16.mxu0 %v160
    %229 = vmatpush1.bf16.msra.mxu0 %v159
    %230 = vmatprep.subr.bf16.mxu0 0
    %231 = vmatpush1.bf16.msra.mxu0 0
    %232 = vmatprep.subr.bf16.mxu0 0
    %233 = vmatpush1.bf16.msra.mxu0 0
    %234 = vmatprep.subr.bf16.mxu0 0
    %235 = vmatpush1.bf16.msra.mxu0 0
    %236 = vmatprep.subr.bf16.mxu0 0
    %237 = vmatpush1.bf16.msra.mxu0 0
    %238 = vmatprep.subr.bf16.mxu0 0
    %239 = vmatpush1.bf16.msra.mxu0 0
    %240 = vmatprep.subr.bf16.mxu0 0
    %241 = vmatpush1.bf16.msra.mxu0 0
    %242 = vmatprep.subr.bf16.mxu0 0
    %243 = vmatpush1.bf16.msra.mxu0 0
    %244 = vmatprep.subr.bf16.mxu0 0
    %245 = vmatpush1.bf16.msra.mxu0 0
    %246 = vmatprep.subr.bf16.mxu0 0
    %247 = vmatpush1.bf16.msra.mxu0 0
    %248 = vmatprep.subr.bf16.mxu0 0
    %249 = vmatpush1.bf16.msra.mxu0 0
    %250 = vmatprep.subr.bf16.mxu0 0
    %251 = vmatpush1.bf16.msra.mxu0 0
    %252 = vmatprep.subr.bf16.mxu0 0
    %253 = vmatpush1.bf16.msra.mxu0 0
    %254 = vmatprep.mubr.bf16.mxu0 0
    %255 = vmatmul.mubr.bf16.gmra.mrb[0].mxu0 %v179
    %v256 = vpop.f32.mrb[0].mxu0
    %v257 = vadd.f32 %v88, %v256
    %v258 = vpop.f32.mrb[0].mxu0
    %v259 = vadd.f32 %v92, %v258
    %v260 = vpop.f32.mrb[0].mxu0
    %v261 = vpop.f32.mrb[0].mxu0
    %262 = vdwg.mxu0
    %263 = vst [vmem:[#allocation2] sm:$0xff] %v216
    %264 = vst [vmem:[#allocation2 + $0x8] sm:$0xff] %v218
    %265 = vst [vmem:[#allocation2 + $0x10] sm:$0xff] %v257
    %266 = vst [vmem:[#allocation2 + $0x18] sm:$0xff] %v259
    %v267 = vld [vmem:[%s4] sm:$0x1]
    %v268 = vpack.c.bf16 %v267, %v267
    %v269 = vld [vmem:[%s5] sm:$0x1]
    %v270 = vld [vmem:[#allocation2] ss:$8 sm:$0xf]
    %v271 = vld [vmem:[#allocation5] sm:$0xff]
    %v272 = vld [vmem:[#allocation5 + $0x8] sm:$0xff]
    %v273 = vld [vmem:[#allocation5 + $0x10] sm:$0xff]
    %v274 = vld [vmem:[#allocation5 + $0x18] sm:$0xff]
    %v275 = vld [vmem:[#allocation5 + $0x20] sm:$0xff]
    %v276 = vld [vmem:[#allocation5 + $0x28] sm:$0xff]
    %v277 = vld [vmem:[#allocation5 + $0x30] sm:$0xff]
    %v278 = vld [vmem:[#allocation5 + $0x38] sm:$0xff]
    %v279 = vld [vmem:[#allocation5 + $0x40] sm:$0xff]
    %v280 = vld [vmem:[#allocation5 + $0x48] sm:$0xff]
    %v281 = vld [vmem:[#allocation5 + $0x50] sm:$0xff]
    %v282 = vld [vmem:[#allocation5 + $0x58] sm:$0xff]
    %v283 = vld [vmem:[#allocation5 + $0x60] sm:$0xff]
    %v284 = vld [vmem:[#allocation5 + $0x68] sm:$0xff]
    %v285 = vld [vmem:[#allocation5 + $0x70] sm:$0xff]
    %v286 = vld [vmem:[#allocation5 + $0x78] sm:$0xff]
    %v287 = vld [vmem:[#allocation5 + $0x80] sm:$0xff]
    %v288 = vld [vmem:[#allocation5 + $0x88] sm:$0xff]
    %v289 = vld [vmem:[#allocation5 + $0x90] sm:$0xff]
    %v290 = vld [vmem:[#allocation5 + $0x98] sm:$0xff]
    %v291 = vld [vmem:[#allocation5 + $0xa0] sm:$0xff]
    %v292 = vld [vmem:[#allocation5 + $0xa8] sm:$0xff]
    %v293 = vld [vmem:[#allocation5 + $0xb0] sm:$0xff]
    %v294 = vld [vmem:[#allocation5 + $0xb8] sm:$0xff]
    %v295 = vld [vmem:[#allocation5 + $0xc0] sm:$0xff]
    %v296 = vld [vmem:[#allocation5 + $0xc8] sm:$0xff]
    %v297 = vld [vmem:[#allocation5 + $0xd0] sm:$0xff]
    %v298 = vld [vmem:[#allocation5 + $0xd8] sm:$0xff]
    %v299 = vld [vmem:[#allocation5 + $0xe0] sm:$0xff]
    %v300 = vld [vmem:[#allocation5 + $0xe8] sm:$0xff]
    %v301 = vld [vmem:[#allocation5 + $0xf0] sm:$0xff]
    %v302 = vld [vmem:[#allocation5 + $0xf8] sm:$0xff]
    %v335 = vunpack.c.l.b16 %v271
    %v336 = vunpack.c.h.b16 %v271
    %v337 = vunpack.c.l.b16 %v272
    %v338 = vunpack.c.h.b16 %v272
    %v339 = vunpack.c.l.b16 %v273
    %v340 = vunpack.c.h.b16 %v273
    %v341 = vunpack.c.l.b16 %v274
    %v342 = vunpack.c.h.b16 %v274
    %v343 = vunpack.c.l.b16 %v275
    %v344 = vunpack.c.h.b16 %v275
    %v345 = vunpack.c.l.b16 %v276
    %v346 = vunpack.c.h.b16 %v276
    %v347 = vunpack.c.l.b16 %v277
    %v348 = vunpack.c.h.b16 %v277
    %v349 = vunpack.c.l.b16 %v278
    %v350 = vunpack.c.h.b16 %v278
    %v351 = vunpack.c.l.b16 %v279
    %v352 = vunpack.c.h.b16 %v279
    %v353 = vunpack.c.l.b16 %v280
    %v354 = vunpack.c.h.b16 %v280
    %v355 = vunpack.c.l.b16 %v281
    %v356 = vunpack.c.h.b16 %v281
    %v357 = vunpack.c.l.b16 %v282
    %v358 = vunpack.c.h.b16 %v282
    %v359 = vunpack.c.l.b16 %v283
    %v360 = vunpack.c.h.b16 %v283
    %v361 = vunpack.c.l.b16 %v284
    %v362 = vunpack.c.h.b16 %v284
    %v363 = vunpack.c.l.b16 %v285
    %v364 = vunpack.c.h.b16 %v285
    %v365 = vunpack.c.l.b16 %v286
    %v366 = vunpack.c.h.b16 %v286
    %v367 = vunpack.c.l.b16 %v287
    %v368 = vunpack.c.h.b16 %v287
    %v369 = vunpack.c.l.b16 %v288
    %v370 = vunpack.c.h.b16 %v288
    %v371 = vunpack.c.l.b16 %v289
    %v372 = vunpack.c.h.b16 %v289
    %v373 = vunpack.c.l.b16 %v290
    %v374 = vunpack.c.h.b16 %v290
    %v375 = vunpack.c.l.b16 %v291
    %v376 = vunpack.c.h.b16 %v291
    %v377 = vunpack.c.l.b16 %v292
    %v378 = vunpack.c.h.b16 %v292
    %v379 = vunpack.c.l.b16 %v293
    %v380 = vunpack.c.h.b16 %v293
    %v381 = vunpack.c.l.b16 %v294
    %v382 = vunpack.c.h.b16 %v294
    %v383 = vunpack.c.l.b16 %v295
    %v384 = vunpack.c.h.b16 %v295
    %v385 = vunpack.c.l.b16 %v296
    %v386 = vunpack.c.h.b16 %v296
    %v387 = vunpack.c.l.b16 %v297
    %v388 = vunpack.c.h.b16 %v297
    %v389 = vunpack.c.l.b16 %v298
    %v390 = vunpack.c.h.b16 %v298
    %v391 = vunpack.c.l.b16 %v299
    %v392 = vunpack.c.h.b16 %v299
    %v393 = vunpack.c.l.b16 %v300
    %v394 = vunpack.c.h.b16 %v300
    %v395 = vunpack.c.l.b16 %v301
    %v396 = vunpack.c.h.b16 %v301
    %v397 = vunpack.c.l.b16 %v302
    %v398 = vunpack.c.h.b16 %v302
    %v399 = vpack.c.b16 %v339, %v335
    %v400 = vpack.c.b16 %v340, %v336
    %v401 = vpack.c.b16 %v341, %v337
    %v402 = vpack.c.b16 %v342, %v338
    %v403 = vpack.c.b16 %v347, %v343
    %v404 = vpack.c.b16 %v348, %v344
    %v405 = vpack.c.b16 %v349, %v345
    %v406 = vpack.c.b16 %v350, %v346
    %v407 = vpack.c.b16 %v355, %v351
    %v408 = vpack.c.b16 %v356, %v352
    %v409 = vpack.c.b16 %v357, %v353
    %v410 = vpack.c.b16 %v358, %v354
    %v411 = vpack.c.b16 %v363, %v359
    %v412 = vpack.c.b16 %v364, %v360
    %v413 = vpack.c.b16 %v365, %v361
    %v414 = vpack.c.b16 %v366, %v362
    %v415 = vpack.c.b16 %v371, %v367
    %v416 = vpack.c.b16 %v372, %v368
    %v417 = vpack.c.b16 %v373, %v369
    %v418 = vpack.c.b16 %v374, %v370
    %v419 = vpack.c.b16 %v379, %v375
    %v420 = vpack.c.b16 %v380, %v376
    %v421 = vpack.c.b16 %v381, %v377
    %v422 = vpack.c.b16 %v382, %v378
    %v423 = vpack.c.b16 %v387, %v383
    %v424 = vpack.c.b16 %v388, %v384
    %v425 = vpack.c.b16 %v389, %v385
    %v426 = vpack.c.b16 %v390, %v386
    %v427 = vpack.c.b16 %v395, %v391
    %v428 = vpack.c.b16 %v396, %v392
    %v429 = vpack.c.b16 %v397, %v393
    %v430 = vpack.c.b16 %v398, %v394
    %463 = vmatprep.subr.bf16.mxu0 %v400
    %464 = vmatpush1.bf16.msra.mxu0 %v399
    %465 = vmatprep.subr.bf16.mxu0 %v404
    %466 = vmatpush1.bf16.msra.mxu0 %v403
    %467 = vmatprep.subr.bf16.mxu0 %v408
    %468 = vmatpush1.bf16.msra.mxu0 %v407
    %469 = vmatprep.subr.bf16.mxu0 %v412
    %470 = vmatpush1.bf16.msra.mxu0 %v411
    %471 = vmatprep.subr.bf16.mxu0 %v416
    %472 = vmatpush1.bf16.msra.mxu0 %v415
    %473 = vmatprep.subr.bf16.mxu0 %v420
    %474 = vmatpush1.bf16.msra.mxu0 %v419
    %475 = vmatprep.subr.bf16.mxu0 %v424
    %476 = vmatpush1.bf16.msra.mxu0 %v423
    %477 = vmatprep.subr.bf16.mxu0 %v428
    %478 = vmatpush1.bf16.msra.mxu0 %v427
    %479 = vmatprep.subr.bf16.mxu0 0
    %480 = vmatpush1.bf16.msra.mxu0 0
    %481 = vmatprep.subr.bf16.mxu0 0
    %482 = vmatpush1.bf16.msra.mxu0 0
    %483 = vmatprep.subr.bf16.mxu0 0
    %484 = vmatpush1.bf16.msra.mxu0 0
    %485 = vmatprep.subr.bf16.mxu0 0
    %486 = vmatpush1.bf16.msra.mxu0 0
    %487 = vmatprep.subr.bf16.mxu0 0
    %488 = vmatpush1.bf16.msra.mxu0 0
    %489 = vmatprep.subr.bf16.mxu0 0
    %490 = vmatpush1.bf16.msra.mxu0 0
    %491 = vmatprep.subr.bf16.mxu0 0
    %492 = vmatpush1.bf16.msra.mxu0 0
    %493 = vmatprep.subr.bf16.mxu0 0
    %494 = vmatpush1.bf16.msra.mxu0 0
    %495 = vmatprep.mubr.bf16.mxu0 0
    %496 = vmatmul.mubr.bf16.gmra.mrb[0].mxu0 %v268
    %v497 = vpop.f32.mrb[0].mxu0
    %v498 = vadd.f32 0.0, %v497
    %v499 = vpop.f32.mrb[0].mxu0
    %v500 = vadd.f32 0.0, %v499
    %v501 = vpop.f32.mrb[0].mxu0
    %v502 = vpop.f32.mrb[0].mxu0
    %503 = vdwg.mxu0
    %504 = vmatprep.subr.bf16.mxu0 %v402
    %505 = vmatpush1.bf16.msra.mxu0 %v401
    %506 = vmatprep.subr.bf16.mxu0 %v406
    %507 = vmatpush1.bf16.msra.mxu0 %v405
    %508 = vmatprep.subr.bf16.mxu0 %v410
    %509 = vmatpush1.bf16.msra.mxu0 %v409
    %510 = vmatprep.subr.bf16.mxu0 %v414
    %511 = vmatpush1.bf16.msra.mxu0 %v413
    %512 = vmatprep.subr.bf16.mxu0 %v418
    %513 = vmatpush1.bf16.msra.mxu0 %v417
    %514 = vmatprep.subr.bf16.mxu0 %v422
    %515 = vmatpush1.bf16.msra.mxu0 %v421
    %516 = vmatprep.subr.bf16.mxu0 %v426
    %517 = vmatpush1.bf16.msra.mxu0 %v425
    %518 = vmatprep.subr.bf16.mxu0 %v430
    %519 = vmatpush1.bf16.msra.mxu0 %v429
    %520 = vmatprep.subr.bf16.mxu0 0
    %521 = vmatpush1.bf16.msra.mxu0 0
    %522 = vmatprep.subr.bf16.mxu0 0
    %523 = vmatpush1.bf16.msra.mxu0 0
    %524 = vmatprep.subr.bf16.mxu0 0
    %525 = vmatpush1.bf16.msra.mxu0 0
    %526 = vmatprep.subr.bf16.mxu0 0
    %527 = vmatpush1.bf16.msra.mxu0 0
    %528 = vmatprep.subr.bf16.mxu0 0
    %529 = vmatpush1.bf16.msra.mxu0 0
    %530 = vmatprep.subr.bf16.mxu0 0
    %531 = vmatpush1.bf16.msra.mxu0 0
    %532 = vmatprep.subr.bf16.mxu0 0
    %533 = vmatpush1.bf16.msra.mxu0 0
    %534 = vmatprep.subr.bf16.mxu0 0
    %535 = vmatpush1.bf16.msra.mxu0 0
    %536 = vmatprep.mubr.bf16.mxu0 0
    %537 = vmatmul.mubr.bf16.gmra.mrb[0].mxu0 %v268
    %v538 = vpop.f32.mrb[0].mxu0
    %v539 = vadd.f32 0.0, %v538
    %v540 = vpop.f32.mrb[0].mxu0
    %v541 = vadd.f32 0.0, %v540
    %v542 = vpop.f32.mrb[0].mxu0
    %v543 = vpop.f32.mrb[0].mxu0
    %544 = vdwg.mxu0
    %v549 = vcombine.low %v498, %v500
    %v550 = vcombine.low %v539, %v541
    %v552 = vunpack.c.l.s4 1966171168
    %v553 = vunpack.c.0.s8 %v552
    %v554 = vlaneseq
    %v555 = vshrl.u32 %v554, 7
    %v556 = vsub.s32 %v553, %v555
    %v557 = vrot.slane %v549, %v556
    %v559 = vunpack.c.l.s4 1966171168
    %v560 = vunpack.c.0.s8 %v559
    %v561 = vlaneseq
    %v562 = vshrl.u32 %v561, 7
    %v563 = vsub.s32 %v560, %v562
    %v564 = vrot.slane %v550, %v563
    %v565 = vcombine.low %v557, %v564
    %v567 = vunpack.c.l.s4 1966171168
    %v568 = vunpack.c.0.s8 %v567
    %v569 = vlaneseq
    %v570 = vshrl.u32 %v569, 7
    %v571 = vsub.s32 %v568, %v570
    %v572 = vrot.slane %v565, %v571
    %v574 = vadd.f32 %v270, %v572
    %v575 = vmul.f32 %v574, 0.5
    %v576 = vtanh.pop %v575
    %v577 = vmul.f32 %v576, 0.5
    %v578 = vadd.f32 %v577, 0.5
    %v580 = vrot.slane %v574, 3
    %v582 = vtanh.pop %v580
    %v584 = vrot.slane %v578, 1
    %v586 = vmul.f32 %v584, %v269
    %v587 = vmul.f32 %v578, %v582
    %v588 = vadd.f32 %v586, %v587
    %v589 = vtanh.pop %v588
    %v590 = vrot.slane %v578, 2
    %v592 = vmul.f32 %v590, %v589
    %v593 = vpack.c.bf16 %v592, %v592
    %s594 = scalar_lea.vmem [#allocation2], 1
    %v595 = vld [vmem:[%s594] ss:$8 sm:$0xf]
    %596 = vmatprep.subr.bf16.mxu0 %v400
    %597 = vmatpush1.bf16.msra.mxu0 %v399
    %598 = vmatprep.subr.bf16.mxu0 %v404
    %599 = vmatpush1.bf16.msra.mxu0 %v403
    %600 = vmatprep.subr.bf16.mxu0 %v408
    %601 = vmatpush1.bf16.msra.mxu0 %v407
    %602 = vmatprep.subr.bf16.mxu0 %v412
    %603 = vmatpush1.bf16.msra.mxu0 %v411
    %604 = vmatprep.subr.bf16.mxu0 %v416
    %605 = vmatpush1.bf16.msra.mxu0 %v415
    %606 = vmatprep.subr.bf16.mxu0 %v420
    %607 = vmatpush1.bf16.msra.mxu0 %v419
    %608 = vmatprep.subr.bf16.mxu0 %v424
    %609 = vmatpush1.bf16.msra.mxu0 %v423
    %610 = vmatprep.subr.bf16.mxu0 %v428
    %611 = vmatpush1.bf16.msra.mxu0 %v427
    %612 = vmatprep.subr.bf16.mxu0 0
    %613 = vmatpush1.bf16.msra.mxu0 0
    %614 = vmatprep.subr.bf16.mxu0 0
    %615 = vmatpush1.bf16.msra.mxu0 0
    %616 = vmatprep.subr.bf16.mxu0 0
    %617 = vmatpush1.bf16.msra.mxu0 0
    %618 = vmatprep.subr.bf16.mxu0 0
    %619 = vmatpush1.bf16.msra.mxu0 0
    %620 = vmatprep.subr.bf16.mxu0 0
    %621 = vmatpush1.bf16.msra.mxu0 0
    %622 = vmatprep.subr.bf16.mxu0 0
    %623 = vmatpush1.bf16.msra.mxu0 0
    %624 = vmatprep.subr.bf16.mxu0 0
    %625 = vmatpush1.bf16.msra.mxu0 0
    %626 = vmatprep.subr.bf16.mxu0 0
    %627 = vmatpush1.bf16.msra.mxu0 0
    %628 = vmatprep.mubr.bf16.mxu0 0
    %629 = vmatmul.mubr.bf16.gmra.mrb[0].mxu0 %v593
    %v630 = vpop.f32.mrb[0].mxu0
    %v631 = vadd.f32 0.0, %v630
    %v632 = vpop.f32.mrb[0].mxu0
    %v633 = vadd.f32 0.0, %v632
    %v634 = vpop.f32.mrb[0].mxu0
    %v635 = vpop.f32.mrb[0].mxu0
    %636 = vdwg.mxu0
    %637 = vmatprep.subr.bf16.mxu0 %v402
    %638 = vmatpush1.bf16.msra.mxu0 %v401
    %639 = vmatprep.subr.bf16.mxu0 %v406
    %640 = vmatpush1.bf16.msra.mxu0 %v405
    %641 = vmatprep.subr.bf16.mxu0 %v410
    %642 = vmatpush1.bf16.msra.mxu0 %v409
    %643 = vmatprep.subr.bf16.mxu0 %v414
    %644 = vmatpush1.bf16.msra.mxu0 %v413
    %645 = vmatprep.subr.bf16.mxu0 %v418
    %646 = vmatpush1.bf16.msra.mxu0 %v417
    %647 = vmatprep.subr.bf16.mxu0 %v422
    %648 = vmatpush1.bf16.msra.mxu0 %v421
    %649 = vmatprep.subr.bf16.mxu0 %v426
    %650 = vmatpush1.bf16.msra.mxu0 %v425
    %651 = vmatprep.subr.bf16.mxu0 %v430
    %652 = vmatpush1.bf16.msra.mxu0 %v429
    %653 = vmatprep.subr.bf16.mxu0 0
    %654 = vmatpush1.bf16.msra.mxu0 0
    %655 = vmatprep.subr.bf16.mxu0 0
    %656 = vmatpush1.bf16.msra.mxu0 0
    %657 = vmatprep.subr.bf16.mxu0 0
    %658 = vmatpush1.bf16.msra.mxu0 0
    %659 = vmatprep.subr.bf16.mxu0 0
    %660 = vmatpush1.bf16.msra.mxu0 0
    %661 = vmatprep.subr.bf16.mxu0 0
    %662 = vmatpush1.bf16.msra.mxu0 0
    %663 = vmatprep.subr.bf16.mxu0 0
    %664 = vmatpush1.bf16.msra.mxu0 0
    %665 = vmatprep.subr.bf16.mxu0 0
    %666 = vmatpush1.bf16.msra.mxu0 0
    %667 = vmatprep.subr.bf16.mxu0 0
    %668 = vmatpush1.bf16.msra.mxu0 0
    %669 = vmatprep.mubr.bf16.mxu0 0
    %670 = vmatmul.mubr.bf16.gmra.mrb[0].mxu0 %v593
    %v671 = vpop.f32.mrb[0].mxu0
    %v672 = vadd.f32 0.0, %v671
    %v673 = vpop.f32.mrb[0].mxu0
    %v674 = vadd.f32 0.0, %v673
    %v675 = vpop.f32.mrb[0].mxu0
    %v676 = vpop.f32.mrb[0].mxu0
    %677 = vdwg.mxu0
    %v682 = vcombine.low %v631, %v633
    %v683 = vcombine.low %v672, %v674
    %v685 = vunpack.c.l.s4 1966171168
    %v686 = vunpack.c.0.s8 %v685
    %v687 = vlaneseq
    %v688 = vshrl.u32 %v687, 7
    %v689 = vsub.s32 %v686, %v688
    %v690 = vrot.slane %v682, %v689
    %v692 = vunpack.c.l.s4 1966171168
    %v693 = vunpack.c.0.s8 %v692
    %v694 = vlaneseq
    %v695 = vshrl.u32 %v694, 7
    %v696 = vsub.s32 %v693, %v695
    %v697 = vrot.slane %v683, %v696
    %v698 = vcombine.low %v690, %v697
    %v700 = vunpack.c.l.s4 1966171168
    %v701 = vunpack.c.0.s8 %v700
    %v702 = vlaneseq
    %v703 = vshrl.u32 %v702, 7
    %v704 = vsub.s32 %v701, %v703
    %v705 = vrot.slane %v698, %v704
    %v707 = vadd.f32 %v595, %v705
    %v708 = vmul.f32 %v707, 0.5
    %v709 = vtanh.pop %v708
    %v710 = vmul.f32 %v709, 0.5
    %v711 = vadd.f32 %v710, 0.5
    %v713 = vrot.slane %v707, 3
    %v715 = vtanh.pop %v713
    %v717 = vrot.slane %v711, 1
    %v719 = vmul.f32 %v717, %v588
    %v720 = vmul.f32 %v711, %v715
    %v721 = vadd.f32 %v719, %v720
    %v722 = vtanh.pop %v721
    %v723 = vrot.slane %v711, 2
    %v725 = vmul.f32 %v723, %v722
    %v726 = vpack.c.bf16 %v725, %v725
    %s727 = scalar_lea.vmem [#allocation2], 2
    %v728 = vld [vmem:[%s727] ss:$8 sm:$0xf]
    %729 = vmatprep.subr.bf16.mxu0 %v400
    %730 = vmatpush1.bf16.msra.mxu0 %v399
    %731 = vmatprep.subr.bf16.mxu0 %v404
    %732 = vmatpush1.bf16.msra.mxu0 %v403
    %733 = vmatprep.subr.bf16.mxu0 %v408
    %734 = vmatpush1.bf16.msra.mxu0 %v407
    %735 = vmatprep.subr.bf16.mxu0 %v412
    %736 = vmatpush1.bf16.msra.mxu0 %v411
    %737 = vmatprep.subr.bf16.mxu0 %v416
    %738 = vmatpush1.bf16.msra.mxu0 %v415
    %739 = vmatprep.subr.bf16.mxu0 %v420
    %740 = vmatpush1.bf16.msra.mxu0 %v419
    %741 = vmatprep.subr.bf16.mxu0 %v424
    %742 = vmatpush1.bf16.msra.mxu0 %v423
    %743 = vmatprep.subr.bf16.mxu0 %v428
    %744 = vmatpush1.bf16.msra.mxu0 %v427
    %745 = vmatprep.subr.bf16.mxu0 0
    %746 = vmatpush1.bf16.msra.mxu0 0
    %747 = vmatprep.subr.bf16.mxu0 0
    %748 = vmatpush1.bf16.msra.mxu0 0
    %749 = vmatprep.subr.bf16.mxu0 0
    %750 = vmatpush1.bf16.msra.mxu0 0
    %751 = vmatprep.subr.bf16.mxu0 0
    %752 = vmatpush1.bf16.msra.mxu0 0
    %753 = vmatprep.subr.bf16.mxu0 0
    %754 = vmatpush1.bf16.msra.mxu0 0
    %755 = vmatprep.subr.bf16.mxu0 0
    %756 = vmatpush1.bf16.msra.mxu0 0
    %757 = vmatprep.subr.bf16.mxu0 0
    %758 = vmatpush1.bf16.msra.mxu0 0
    %759 = vmatprep.subr.bf16.mxu0 0
    %760 = vmatpush1.bf16.msra.mxu0 0
    %761 = vmatprep.mubr.bf16.mxu0 0
    %762 = vmatmul.mubr.bf16.gmra.mrb[0].mxu0 %v726
    %v763 = vpop.f32.mrb[0].mxu0
    %v764 = vadd.f32 0.0, %v763
    %v765 = vpop.f32.mrb[0].mxu0
    %v766 = vadd.f32 0.0, %v765
    %v767 = vpop.f32.mrb[0].mxu0
    %v768 = vpop.f32.mrb[0].mxu0
    %769 = vdwg.mxu0
    %770 = vmatprep.subr.bf16.mxu0 %v402
    %771 = vmatpush1.bf16.msra.mxu0 %v401
    %772 = vmatprep.subr.bf16.mxu0 %v406
    %773 = vmatpush1.bf16.msra.mxu0 %v405
    %774 = vmatprep.subr.bf16.mxu0 %v410
    %775 = vmatpush1.bf16.msra.mxu0 %v409
    %776 = vmatprep.subr.bf16.mxu0 %v414
    %777 = vmatpush1.bf16.msra.mxu0 %v413
    %778 = vmatprep.subr.bf16.mxu0 %v418
    %779 = vmatpush1.bf16.msra.mxu0 %v417
    %780 = vmatprep.subr.bf16.mxu0 %v422
    %781 = vmatpush1.bf16.msra.mxu0 %v421
    %782 = vmatprep.subr.bf16.mxu0 %v426
    %783 = vmatpush1.bf16.msra.mxu0 %v425
    %784 = vmatprep.subr.bf16.mxu0 %v430
    %785 = vmatpush1.bf16.msra.mxu0 %v429
    %786 = vmatprep.subr.bf16.mxu0 0
    %787 = vmatpush1.bf16.msra.mxu0 0
    %788 = vmatprep.subr.bf16.mxu0 0
    %789 = vmatpush1.bf16.msra.mxu0 0
    %790 = vmatprep.subr.bf16.mxu0 0
    %791 = vmatpush1.bf16.msra.mxu0 0
    %792 = vmatprep.subr.bf16.mxu0 0
    %793 = vmatpush1.bf16.msra.mxu0 0
    %794 = vmatprep.subr.bf16.mxu0 0
    %795 = vmatpush1.bf16.msra.mxu0 0
    %796 = vmatprep.subr.bf16.mxu0 0
    %797 = vmatpush1.bf16.msra.mxu0 0
    %798 = vmatprep.subr.bf16.mxu0 0
    %799 = vmatpush1.bf16.msra.mxu0 0
    %800 = vmatprep.subr.bf16.mxu0 0
    %801 = vmatpush1.bf16.msra.mxu0 0
    %802 = vmatprep.mubr.bf16.mxu0 0
    %803 = vmatmul.mubr.bf16.gmra.mrb[0].mxu0 %v726
    %v804 = vpop.f32.mrb[0].mxu0
    %v805 = vadd.f32 0.0, %v804
    %v806 = vpop.f32.mrb[0].mxu0
    %v807 = vadd.f32 0.0, %v806
    %v808 = vpop.f32.mrb[0].mxu0
    %v809 = vpop.f32.mrb[0].mxu0
    %810 = vdwg.mxu0
    %v815 = vcombine.low %v764, %v766
    %v816 = vcombine.low %v805, %v807
    %v818 = vunpack.c.l.s4 1966171168
    %v819 = vunpack.c.0.s8 %v818
    %v820 = vlaneseq
    %v821 = vshrl.u32 %v820, 7
    %v822 = vsub.s32 %v819, %v821
    %v823 = vrot.slane %v815, %v822
    %v825 = vunpack.c.l.s4 1966171168
    %v826 = vunpack.c.0.s8 %v825
    %v827 = vlaneseq
    %v828 = vshrl.u32 %v827, 7
    %v829 = vsub.s32 %v826, %v828
    %v830 = vrot.slane %v816, %v829
    %v831 = vcombine.low %v823, %v830
    %v833 = vunpack.c.l.s4 1966171168
    %v834 = vunpack.c.0.s8 %v833
    %v835 = vlaneseq
    %v836 = vshrl.u32 %v835, 7
    %v837 = vsub.s32 %v834, %v836
    %v838 = vrot.slane %v831, %v837
    %v840 = vadd.f32 %v728, %v838
    %v841 = vmul.f32 %v840, 0.5
    %v842 = vtanh.pop %v841
    %v843 = vmul.f32 %v842, 0.5
    %v844 = vadd.f32 %v843, 0.5
    %v846 = vrot.slane %v840, 3
    %v848 = vtanh.pop %v846
    %v850 = vrot.slane %v844, 1
    %v852 = vmul.f32 %v850, %v721
    %v853 = vmul.f32 %v844, %v848
    %v854 = vadd.f32 %v852, %v853
    %v855 = vtanh.pop %v854
    %v856 = vrot.slane %v844, 2
    %v858 = vmul.f32 %v856, %v855
    %v859 = vpack.c.bf16 %v858, %v858
    %s860 = scalar_lea.vmem [#allocation2], 3
    %v861 = vld [vmem:[%s860] ss:$8 sm:$0xf]
    %862 = vmatprep.subr.bf16.mxu0 %v400
    %863 = vmatpush1.bf16.msra.mxu0 %v399
    %864 = vmatprep.subr.bf16.mxu0 %v404
    %865 = vmatpush1.bf16.msra.mxu0 %v403
    %866 = vmatprep.subr.bf16.mxu0 %v408
    %867 = vmatpush1.bf16.msra.mxu0 %v407
    %868 = vmatprep.subr.bf16.mxu0 %v412
    %869 = vmatpush1.bf16.msra.mxu0 %v411
    %870 = vmatprep.subr.bf16.mxu0 %v416
    %871 = vmatpush1.bf16.msra.mxu0 %v415
    %872 = vmatprep.subr.bf16.mxu0 %v420
    %873 = vmatpush1.bf16.msra.mxu0 %v419
    %874 = vmatprep.subr.bf16.mxu0 %v424
    %875 = vmatpush1.bf16.msra.mxu0 %v423
    %876 = vmatprep.subr.bf16.mxu0 %v428
    %877 = vmatpush1.bf16.msra.mxu0 %v427
    %878 = vmatprep.subr.bf16.mxu0 0
    %879 = vmatpush1.bf16.msra.mxu0 0
    %880 = vmatprep.subr.bf16.mxu0 0
    %881 = vmatpush1.bf16.msra.mxu0 0
    %882 = vmatprep.subr.bf16.mxu0 0
    %883 = vmatpush1.bf16.msra.mxu0 0
    %884 = vmatprep.subr.bf16.mxu0 0
    %885 = vmatpush1.bf16.msra.mxu0 0
    %886 = vmatprep.subr.bf16.mxu0 0
    %887 = vmatpush1.bf16.msra.mxu0 0
    %888 = vmatprep.subr.bf16.mxu0 0
    %889 = vmatpush1.bf16.msra.mxu0 0
    %890 = vmatprep.subr.bf16.mxu0 0
    %891 = vmatpush1.bf16.msra.mxu0 0
    %892 = vmatprep.subr.bf16.mxu0 0
    %893 = vmatpush1.bf16.msra.mxu0 0
    %894 = vmatprep.mubr.bf16.mxu0 0
    %895 = vmatmul.mubr.bf16.gmra.mrb[0].mxu0 %v859
    %v896 = vpop.f32.mrb[0].mxu0
    %v897 = vadd.f32 0.0, %v896
    %v898 = vpop.f32.mrb[0].mxu0
    %v899 = vadd.f32 0.0, %v898
    %v900 = vpop.f32.mrb[0].mxu0
    %v901 = vpop.f32.mrb[0].mxu0
    %902 = vdwg.mxu0
    %903 = vmatprep.subr.bf16.mxu0 %v402
    %904 = vmatpush1.bf16.msra.mxu0 %v401
    %905 = vmatprep.subr.bf16.mxu0 %v406
    %906 = vmatpush1.bf16.msra.mxu0 %v405
    %907 = vmatprep.subr.bf16.mxu0 %v410
    %908 = vmatpush1.bf16.msra.mxu0 %v409
    %909 = vmatprep.subr.bf16.mxu0 %v414
    %910 = vmatpush1.bf16.msra.mxu0 %v413
    %911 = vmatprep.subr.bf16.mxu0 %v418
    %912 = vmatpush1.bf16.msra.mxu0 %v417
    %913 = vmatprep.subr.bf16.mxu0 %v422
    %914 = vmatpush1.bf16.msra.mxu0 %v421
    %915 = vmatprep.subr.bf16.mxu0 %v426
    %916 = vmatpush1.bf16.msra.mxu0 %v425
    %917 = vmatprep.subr.bf16.mxu0 %v430
    %918 = vmatpush1.bf16.msra.mxu0 %v429
    %919 = vmatprep.subr.bf16.mxu0 0
    %920 = vmatpush1.bf16.msra.mxu0 0
    %921 = vmatprep.subr.bf16.mxu0 0
    %922 = vmatpush1.bf16.msra.mxu0 0
    %923 = vmatprep.subr.bf16.mxu0 0
    %924 = vmatpush1.bf16.msra.mxu0 0
    %925 = vmatprep.subr.bf16.mxu0 0
    %926 = vmatpush1.bf16.msra.mxu0 0
    %927 = vmatprep.subr.bf16.mxu0 0
    %928 = vmatpush1.bf16.msra.mxu0 0
    %929 = vmatprep.subr.bf16.mxu0 0
    %930 = vmatpush1.bf16.msra.mxu0 0
    %931 = vmatprep.subr.bf16.mxu0 0
    %932 = vmatpush1.bf16.msra.mxu0 0
    %933 = vmatprep.subr.bf16.mxu0 0
    %934 = vmatpush1.bf16.msra.mxu0 0
    %935 = vmatprep.mubr.bf16.mxu0 0
    %936 = vmatmul.mubr.bf16.gmra.mrb[0].mxu0 %v859
    %v937 = vpop.f32.mrb[0].mxu0
    %v938 = vadd.f32 0.0, %v937
    %v939 = vpop.f32.mrb[0].mxu0
    %v940 = vadd.f32 0.0, %v939
    %v941 = vpop.f32.mrb[0].mxu0
    %v942 = vpop.f32.mrb[0].mxu0
    %943 = vdwg.mxu0
    %v948 = vcombine.low %v897, %v899
    %v949 = vcombine.low %v938, %v940
    %v951 = vunpack.c.l.s4 1966171168
    %v952 = vunpack.c.0.s8 %v951
    %v953 = vlaneseq
    %v954 = vshrl.u32 %v953, 7
    %v955 = vsub.s32 %v952, %v954
    %v956 = vrot.slane %v948, %v955
    %v958 = vunpack.c.l.s4 1966171168
    %v959 = vunpack.c.0.s8 %v958
    %v960 = vlaneseq
    %v961 = vshrl.u32 %v960, 7
    %v962 = vsub.s32 %v959, %v961
    %v963 = vrot.slane %v949, %v962
    %v964 = vcombine.low %v956, %v963
    %v966 = vunpack.c.l.s4 1966171168
    %v967 = vunpack.c.0.s8 %v966
    %v968 = vlaneseq
    %v969 = vshrl.u32 %v968, 7
    %v970 = vsub.s32 %v967, %v969
    %v971 = vrot.slane %v964, %v970
    %v973 = vadd.f32 %v861, %v971
    %v974 = vmul.f32 %v973, 0.5
    %v975 = vtanh.pop %v974
    %v976 = vmul.f32 %v975, 0.5
    %v977 = vadd.f32 %v976, 0.5
    %v979 = vrot.slane %v973, 3
    %v981 = vtanh.pop %v979
    %v983 = vrot.slane %v977, 1
    %v985 = vmul.f32 %v983, %v854
    %v986 = vmul.f32 %v977, %v981
    %v987 = vadd.f32 %v985, %v986
    %v988 = vtanh.pop %v987
    %v989 = vrot.slane %v977, 2
    %v991 = vmul.f32 %v989, %v988
    %v992 = vpack.c.bf16 %v991, %v991
    %s993 = scalar_lea.vmem [#allocation2], 4
    %v994 = vld [vmem:[%s993] ss:$8 sm:$0xf]
    %995 = vmatprep.subr.bf16.mxu0 %v400
    %996 = vmatpush1.bf16.msra.mxu0 %v399
    %997 = vmatprep.subr.bf16.mxu0 %v404
    %998 = vmatpush1.bf16.msra.mxu0 %v403
    %999 = vmatprep.subr.bf16.mxu0 %v408
    %1000 = vmatpush1.bf16.msra.mxu0 %v407
    %1001 = vmatprep.subr.bf16.mxu0 %v412
    %1002 = vmatpush1.bf16.msra.mxu0 %v411
    %1003 = vmatprep.subr.bf16.mxu0 %v416
    %1004 = vmatpush1.bf16.msra.mxu0 %v415
    %1005 = vmatprep.subr.bf16.mxu0 %v420
    %1006 = vmatpush1.bf16.msra.mxu0 %v419
    %1007 = vmatprep.subr.bf16.mxu0 %v424
    %1008 = vmatpush1.bf16.msra.mxu0 %v423
    %1009 = vmatprep.subr.bf16.mxu0 %v428
    %1010 = vmatpush1.bf16.msra.mxu0 %v427
    %1011 = vmatprep.subr.bf16.mxu0 0
    %1012 = vmatpush1.bf16.msra.mxu0 0
    %1013 = vmatprep.subr.bf16.mxu0 0
    %1014 = vmatpush1.bf16.msra.mxu0 0
    %1015 = vmatprep.subr.bf16.mxu0 0
    %1016 = vmatpush1.bf16.msra.mxu0 0
    %1017 = vmatprep.subr.bf16.mxu0 0
    %1018 = vmatpush1.bf16.msra.mxu0 0
    %1019 = vmatprep.subr.bf16.mxu0 0
    %1020 = vmatpush1.bf16.msra.mxu0 0
    %1021 = vmatprep.subr.bf16.mxu0 0
    %1022 = vmatpush1.bf16.msra.mxu0 0
    %1023 = vmatprep.subr.bf16.mxu0 0
    %1024 = vmatpush1.bf16.msra.mxu0 0
    %1025 = vmatprep.subr.bf16.mxu0 0
    %1026 = vmatpush1.bf16.msra.mxu0 0
    %1027 = vmatprep.mubr.bf16.mxu0 0
    %1028 = vmatmul.mubr.bf16.gmra.mrb[0].mxu0 %v992
    %v1029 = vpop.f32.mrb[0].mxu0
    %v1030 = vadd.f32 0.0, %v1029
    %v1031 = vpop.f32.mrb[0].mxu0
    %v1032 = vadd.f32 0.0, %v1031
    %v1033 = vpop.f32.mrb[0].mxu0
    %v1034 = vpop.f32.mrb[0].mxu0
    %1035 = vdwg.mxu0
    %1036 = vmatprep.subr.bf16.mxu0 %v402
    %1037 = vmatpush1.bf16.msra.mxu0 %v401
    %1038 = vmatprep.subr.bf16.mxu0 %v406
    %1039 = vmatpush1.bf16.msra.mxu0 %v405
    %1040 = vmatprep.subr.bf16.mxu0 %v410
    %1041 = vmatpush1.bf16.msra.mxu0 %v409
    %1042 = vmatprep.subr.bf16.mxu0 %v414
    %1043 = vmatpush1.bf16.msra.mxu0 %v413
    %1044 = vmatprep.subr.bf16.mxu0 %v418
    %1045 = vmatpush1.bf16.msra.mxu0 %v417
    %1046 = vmatprep.subr.bf16.mxu0 %v422
    %1047 = vmatpush1.bf16.msra.mxu0 %v421
    %1048 = vmatprep.subr.bf16.mxu0 %v426
    %1049 = vmatpush1.bf16.msra.mxu0 %v425
    %1050 = vmatprep.subr.bf16.mxu0 %v430
    %1051 = vmatpush1.bf16.msra.mxu0 %v429
    %1052 = vmatprep.subr.bf16.mxu0 0
    %1053 = vmatpush1.bf16.msra.mxu0 0
    %1054 = vmatprep.subr.bf16.mxu0 0
    %1055 = vmatpush1.bf16.msra.mxu0 0
    %1056 = vmatprep.subr.bf16.mxu0 0
    %1057 = vmatpush1.bf16.msra.mxu0 0
    %1058 = vmatprep.subr.bf16.mxu0 0
    %1059 = vmatpush1.bf16.msra.mxu0 0
    %1060 = vmatprep.subr.bf16.mxu0 0
    %1061 = vmatpush1.bf16.msra.mxu0 0
    %1062 = vmatprep.subr.bf16.mxu0 0
    %1063 = vmatpush1.bf16.msra.mxu0 0
    %1064 = vmatprep.subr.bf16.mxu0 0
    %1065 = vmatpush1.bf16.msra.mxu0 0
    %1066 = vmatprep.subr.bf16.mxu0 0
    %1067 = vmatpush1.bf16.msra.mxu0 0
    %1068 = vmatprep.mubr.bf16.mxu0 0
    %1069 = vmatmul.mubr.bf16.gmra.mrb[0].mxu0 %v992
    %v1070 = vpop.f32.mrb[0].mxu0
    %v1071 = vadd.f32 0.0, %v1070
    %v1072 = vpop.f32.mrb[0].mxu0
    %v1073 = vadd.f32 0.0, %v1072
    %v1074 = vpop.f32.mrb[0].mxu0
    %v1075 = vpop.f32.mrb[0].mxu0
    %1076 = vdwg.mxu0
    %v1081 = vcombine.low %v1030, %v1032
    %v1082 = vcombine.low %v1071, %v1073
    %v1084 = vunpack.c.l.s4 1966171168
    %v1085 = vunpack.c.0.s8 %v1084
    %v1086 = vlaneseq
    %v1087 = vshrl.u32 %v1086, 7
    %v1088 = vsub.s32 %v1085, %v1087
    %v1089 = vrot.slane %v1081, %v1088
    %v1091 = vunpack.c.l.s4 1966171168
    %v1092 = vunpack.c.0.s8 %v1091
    %v1093 = vlaneseq
    %v1094 = vshrl.u32 %v1093, 7
    %v1095 = vsub.s32 %v1092, %v1094
    %v1096 = vrot.slane %v1082, %v1095
    %v1097 = vcombine.low %v1089, %v1096
    %v1099 = vunpack.c.l.s4 1966171168
    %v1100 = vunpack.c.0.s8 %v1099
    %v1101 = vlaneseq
    %v1102 = vshrl.u32 %v1101, 7
    %v1103 = vsub.s32 %v1100, %v1102
    %v1104 = vrot.slane %v1097, %v1103
    %v1106 = vadd.f32 %v994, %v1104
    %v1107 = vmul.f32 %v1106, 0.5
    %v1108 = vtanh.pop %v1107
    %v1109 = vmul.f32 %v1108, 0.5
    %v1110 = vadd.f32 %v1109, 0.5
    %v1112 = vrot.slane %v1106, 3
    %v1114 = vtanh.pop %v1112
    %v1116 = vrot.slane %v1110, 1
    %v1118 = vmul.f32 %v1116, %v987
    %v1119 = vmul.f32 %v1110, %v1114
    %v1120 = vadd.f32 %v1118, %v1119
    %v1121 = vtanh.pop %v1120
    %v1122 = vrot.slane %v1110, 2
    %v1124 = vmul.f32 %v1122, %v1121
    %v1125 = vpack.c.bf16 %v1124, %v1124
    %s1126 = scalar_lea.vmem [#allocation2], 5
    %v1127 = vld [vmem:[%s1126] ss:$8 sm:$0xf]
    %1128 = vmatprep.subr.bf16.mxu0 %v400
    %1129 = vmatpush1.bf16.msra.mxu0 %v399
    %1130 = vmatprep.subr.bf16.mxu0 %v404
    %1131 = vmatpush1.bf16.msra.mxu0 %v403
    %1132 = vmatprep.subr.bf16.mxu0 %v408
    %1133 = vmatpush1.bf16.msra.mxu0 %v407
    %1134 = vmatprep.subr.bf16.mxu0 %v412
    %1135 = vmatpush1.bf16.msra.mxu0 %v411
    %1136 = vmatprep.subr.bf16.mxu0 %v416
    %1137 = vmatpush1.bf16.msra.mxu0 %v415
    %1138 = vmatprep.subr.bf16.mxu0 %v420
    %1139 = vmatpush1.bf16.msra.mxu0 %v419
    %1140 = vmatprep.subr.bf16.mxu0 %v424
    %1141 = vmatpush1.bf16.msra.mxu0 %v423
    %1142 = vmatprep.subr.bf16.mxu0 %v428
    %1143 = vmatpush1.bf16.msra.mxu0 %v427
    %1144 = vmatprep.subr.bf16.mxu0 0
    %1145 = vmatpush1.bf16.msra.mxu0 0
    %1146 = vmatprep.subr.bf16.mxu0 0
    %1147 = vmatpush1.bf16.msra.mxu0 0
    %1148 = vmatprep.subr.bf16.mxu0 0
    %1149 = vmatpush1.bf16.msra.mxu0 0
    %1150 = vmatprep.subr.bf16.mxu0 0
    %1151 = vmatpush1.bf16.msra.mxu0 0
    %1152 = vmatprep.subr.bf16.mxu0 0
    %1153 = vmatpush1.bf16.msra.mxu0 0
    %1154 = vmatprep.subr.bf16.mxu0 0
    %1155 = vmatpush1.bf16.msra.mxu0 0
    %1156 = vmatprep.subr.bf16.mxu0 0
    %1157 = vmatpush1.bf16.msra.mxu0 0
    %1158 = vmatprep.subr.bf16.mxu0 0
    %1159 = vmatpush1.bf16.msra.mxu0 0
    %1160 = vmatprep.mubr.bf16.mxu0 0
    %1161 = vmatmul.mubr.bf16.gmra.mrb[0].mxu0 %v1125
    %v1162 = vpop.f32.mrb[0].mxu0
    %v1163 = vadd.f32 0.0, %v1162
    %v1164 = vpop.f32.mrb[0].mxu0
    %v1165 = vadd.f32 0.0, %v1164
    %v1166 = vpop.f32.mrb[0].mxu0
    %v1167 = vpop.f32.mrb[0].mxu0
    %1168 = vdwg.mxu0
    %1169 = vmatprep.subr.bf16.mxu0 %v402
    %1170 = vmatpush1.bf16.msra.mxu0 %v401
    %1171 = vmatprep.subr.bf16.mxu0 %v406
    %1172 = vmatpush1.bf16.msra.mxu0 %v405
    %1173 = vmatprep.subr.bf16.mxu0 %v410
    %1174 = vmatpush1.bf16.msra.mxu0 %v409
    %1175 = vmatprep.subr.bf16.mxu0 %v414
    %1176 = vmatpush1.bf16.msra.mxu0 %v413
    %1177 = vmatprep.subr.bf16.mxu0 %v418
    %1178 = vmatpush1.bf16.msra.mxu0 %v417
    %1179 = vmatprep.subr.bf16.mxu0 %v422
    %1180 = vmatpush1.bf16.msra.mxu0 %v421
    %1181 = vmatprep.subr.bf16.mxu0 %v426
    %1182 = vmatpush1.bf16.msra.mxu0 %v425
    %1183 = vmatprep.subr.bf16.mxu0 %v430
    %1184 = vmatpush1.bf16.msra.mxu0 %v429
    %1185 = vmatprep.subr.bf16.mxu0 0
    %1186 = vmatpush1.bf16.msra.mxu0 0
    %1187 = vmatprep.subr.bf16.mxu0 0
    %1188 = vmatpush1.bf16.msra.mxu0 0
    %1189 = vmatprep.subr.bf16.mxu0 0
    %1190 = vmatpush1.bf16.msra.mxu0 0
    %1191 = vmatprep.subr.bf16.mxu0 0
    %1192 = vmatpush1.bf16.msra.mxu0 0
    %1193 = vmatprep.subr.bf16.mxu0 0
    %1194 = vmatpush1.bf16.msra.mxu0 0
    %1195 = vmatprep.subr.bf16.mxu0 0
    %1196 = vmatpush1.bf16.msra.mxu0 0
    %1197 = vmatprep.subr.bf16.mxu0 0
    %1198 = vmatpush1.bf16.msra.mxu0 0
    %1199 = vmatprep.subr.bf16.mxu0 0
    %1200 = vmatpush1.bf16.msra.mxu0 0
    %1201 = vmatprep.mubr.bf16.mxu0 0
    %1202 = vmatmul.mubr.bf16.gmra.mrb[0].mxu0 %v1125
    %v1203 = vpop.f32.mrb[0].mxu0
    %v1204 = vadd.f32 0.0, %v1203
    %v1205 = vpop.f32.mrb[0].mxu0
    %v1206 = vadd.f32 0.0, %v1205
    %v1207 = vpop.f32.mrb[0].mxu0
    %v1208 = vpop.f32.mrb[0].mxu0
    %1209 = vdwg.mxu0
    %v1214 = vcombine.low %v1163, %v1165
    %v1215 = vcombine.low %v1204, %v1206
    %v1217 = vunpack.c.l.s4 1966171168
    %v1218 = vunpack.c.0.s8 %v1217
    %v1219 = vlaneseq
    %v1220 = vshrl.u32 %v1219, 7
    %v1221 = vsub.s32 %v1218, %v1220
    %v1222 = vrot.slane %v1214, %v1221
    %v1224 = vunpack.c.l.s4 1966171168
    %v1225 = vunpack.c.0.s8 %v1224
    %v1226 = vlaneseq
    %v1227 = vshrl.u32 %v1226, 7
    %v1228 = vsub.s32 %v1225, %v1227
    %v1229 = vrot.slane %v1215, %v1228
    %v1230 = vcombine.low %v1222, %v1229
    %v1232 = vunpack.c.l.s4 1966171168
    %v1233 = vunpack.c.0.s8 %v1232
    %v1234 = vlaneseq
    %v1235 = vshrl.u32 %v1234, 7
    %v1236 = vsub.s32 %v1233, %v1235
    %v1237 = vrot.slane %v1230, %v1236
    %v1239 = vadd.f32 %v1127, %v1237
    %v1240 = vmul.f32 %v1239, 0.5
    %v1241 = vtanh.pop %v1240
    %v1242 = vmul.f32 %v1241, 0.5
    %v1243 = vadd.f32 %v1242, 0.5
    %v1245 = vrot.slane %v1239, 3
    %v1247 = vtanh.pop %v1245
    %v1249 = vrot.slane %v1243, 1
    %v1251 = vmul.f32 %v1249, %v1120
    %v1252 = vmul.f32 %v1243, %v1247
    %v1253 = vadd.f32 %v1251, %v1252
    %v1254 = vtanh.pop %v1253
    %v1255 = vrot.slane %v1243, 2
    %v1257 = vmul.f32 %v1255, %v1254
    %v1258 = vpack.c.bf16 %v1257, %v1257
    %s1259 = scalar_lea.vmem [#allocation2], 6
    %v1260 = vld [vmem:[%s1259] ss:$8 sm:$0xf]
    %1261 = vmatprep.subr.bf16.mxu0 %v400
    %1262 = vmatpush1.bf16.msra.mxu0 %v399
    %1263 = vmatprep.subr.bf16.mxu0 %v404
    %1264 = vmatpush1.bf16.msra.mxu0 %v403
    %1265 = vmatprep.subr.bf16.mxu0 %v408
    %1266 = vmatpush1.bf16.msra.mxu0 %v407
    %1267 = vmatprep.subr.bf16.mxu0 %v412
    %1268 = vmatpush1.bf16.msra.mxu0 %v411
    %1269 = vmatprep.subr.bf16.mxu0 %v416
    %1270 = vmatpush1.bf16.msra.mxu0 %v415
    %1271 = vmatprep.subr.bf16.mxu0 %v420
    %1272 = vmatpush1.bf16.msra.mxu0 %v419
    %1273 = vmatprep.subr.bf16.mxu0 %v424
    %1274 = vmatpush1.bf16.msra.mxu0 %v423
    %1275 = vmatprep.subr.bf16.mxu0 %v428
    %1276 = vmatpush1.bf16.msra.mxu0 %v427
    %1277 = vmatprep.subr.bf16.mxu0 0
    %1278 = vmatpush1.bf16.msra.mxu0 0
    %1279 = vmatprep.subr.bf16.mxu0 0
    %1280 = vmatpush1.bf16.msra.mxu0 0
    %1281 = vmatprep.subr.bf16.mxu0 0
    %1282 = vmatpush1.bf16.msra.mxu0 0
    %1283 = vmatprep.subr.bf16.mxu0 0
    %1284 = vmatpush1.bf16.msra.mxu0 0
    %1285 = vmatprep.subr.bf16.mxu0 0
    %1286 = vmatpush1.bf16.msra.mxu0 0
    %1287 = vmatprep.subr.bf16.mxu0 0
    %1288 = vmatpush1.bf16.msra.mxu0 0
    %1289 = vmatprep.subr.bf16.mxu0 0
    %1290 = vmatpush1.bf16.msra.mxu0 0
    %1291 = vmatprep.subr.bf16.mxu0 0
    %1292 = vmatpush1.bf16.msra.mxu0 0
    %1293 = vmatprep.mubr.bf16.mxu0 0
    %1294 = vmatmul.mubr.bf16.gmra.mrb[0].mxu0 %v1258
    %v1295 = vpop.f32.mrb[0].mxu0
    %v1296 = vadd.f32 0.0, %v1295
    %v1297 = vpop.f32.mrb[0].mxu0
    %v1298 = vadd.f32 0.0, %v1297
    %v1299 = vpop.f32.mrb[0].mxu0
    %v1300 = vpop.f32.mrb[0].mxu0
    %1301 = vdwg.mxu0
    %1302 = vmatprep.subr.bf16.mxu0 %v402
    %1303 = vmatpush1.bf16.msra.mxu0 %v401
    %1304 = vmatprep.subr.bf16.mxu0 %v406
    %1305 = vmatpush1.bf16.msra.mxu0 %v405
    %1306 = vmatprep.subr.bf16.mxu0 %v410
    %1307 = vmatpush1.bf16.msra.mxu0 %v409
    %1308 = vmatprep.subr.bf16.mxu0 %v414
    %1309 = vmatpush1.bf16.msra.mxu0 %v413
    %1310 = vmatprep.subr.bf16.mxu0 %v418
    %1311 = vmatpush1.bf16.msra.mxu0 %v417
    %1312 = vmatprep.subr.bf16.mxu0 %v422
    %1313 = vmatpush1.bf16.msra.mxu0 %v421
    %1314 = vmatprep.subr.bf16.mxu0 %v426
    %1315 = vmatpush1.bf16.msra.mxu0 %v425
    %1316 = vmatprep.subr.bf16.mxu0 %v430
    %1317 = vmatpush1.bf16.msra.mxu0 %v429
    %1318 = vmatprep.subr.bf16.mxu0 0
    %1319 = vmatpush1.bf16.msra.mxu0 0
    %1320 = vmatprep.subr.bf16.mxu0 0
    %1321 = vmatpush1.bf16.msra.mxu0 0
    %1322 = vmatprep.subr.bf16.mxu0 0
    %1323 = vmatpush1.bf16.msra.mxu0 0
    %1324 = vmatprep.subr.bf16.mxu0 0
    %1325 = vmatpush1.bf16.msra.mxu0 0
    %1326 = vmatprep.subr.bf16.mxu0 0
    %1327 = vmatpush1.bf16.msra.mxu0 0
    %1328 = vmatprep.subr.bf16.mxu0 0
    %1329 = vmatpush1.bf16.msra.mxu0 0
    %1330 = vmatprep.subr.bf16.mxu0 0
    %1331 = vmatpush1.bf16.msra.mxu0 0
    %1332 = vmatprep.subr.bf16.mxu0 0
    %1333 = vmatpush1.bf16.msra.mxu0 0
    %1334 = vmatprep.mubr.bf16.mxu0 0
    %1335 = vmatmul.mubr.bf16.gmra.mrb[0].mxu0 %v1258
    %v1336 = vpop.f32.mrb[0].mxu0
    %v1337 = vadd.f32 0.0, %v1336
    %v1338 = vpop.f32.mrb[0].mxu0
    %v1339 = vadd.f32 0.0, %v1338
    %v1340 = vpop.f32.mrb[0].mxu0
    %v1341 = vpop.f32.mrb[0].mxu0
    %1342 = vdwg.mxu0
    %v1347 = vcombine.low %v1296, %v1298
    %v1348 = vcombine.low %v1337, %v1339
    %v1350 = vunpack.c.l.s4 1966171168
    %v1351 = vunpack.c.0.s8 %v1350
    %v1352 = vlaneseq
    %v1353 = vshrl.u32 %v1352, 7
    %v1354 = vsub.s32 %v1351, %v1353
    %v1355 = vrot.slane %v1347, %v1354
    %v1357 = vunpack.c.l.s4 1966171168
    %v1358 = vunpack.c.0.s8 %v1357
    %v1359 = vlaneseq
    %v1360 = vshrl.u32 %v1359, 7
    %v1361 = vsub.s32 %v1358, %v1360
    %v1362 = vrot.slane %v1348, %v1361
    %v1363 = vcombine.low %v1355, %v1362
    %v1365 = vunpack.c.l.s4 1966171168
    %v1366 = vunpack.c.0.s8 %v1365
    %v1367 = vlaneseq
    %v1368 = vshrl.u32 %v1367, 7
    %v1369 = vsub.s32 %v1366, %v1368
    %v1370 = vrot.slane %v1363, %v1369
    %v1372 = vadd.f32 %v1260, %v1370
    %v1373 = vmul.f32 %v1372, 0.5
    %v1374 = vtanh.pop %v1373
    %v1375 = vmul.f32 %v1374, 0.5
    %v1376 = vadd.f32 %v1375, 0.5
    %v1378 = vrot.slane %v1372, 3
    %v1380 = vtanh.pop %v1378
    %v1382 = vrot.slane %v1376, 1
    %v1384 = vmul.f32 %v1382, %v1253
    %v1385 = vmul.f32 %v1376, %v1380
    %v1386 = vadd.f32 %v1384, %v1385
    %v1387 = vtanh.pop %v1386
    %v1388 = vrot.slane %v1376, 2
    %v1390 = vmul.f32 %v1388, %v1387
    %v1391 = vpack.c.bf16 %v1390, %v1390
    %s1392 = scalar_lea.vmem [#allocation2], 7
    %v1393 = vld [vmem:[%s1392] ss:$8 sm:$0xf]
    %1394 = vmatprep.subr.bf16.mxu0 %v400
    %1395 = vmatpush1.bf16.msra.mxu0 %v399
    %1396 = vmatprep.subr.bf16.mxu0 %v404
    %1397 = vmatpush1.bf16.msra.mxu0 %v403
    %1398 = vmatprep.subr.bf16.mxu0 %v408
    %1399 = vmatpush1.bf16.msra.mxu0 %v407
    %1400 = vmatprep.subr.bf16.mxu0 %v412
    %1401 = vmatpush1.bf16.msra.mxu0 %v411
    %1402 = vmatprep.subr.bf16.mxu0 %v416
    %1403 = vmatpush1.bf16.msra.mxu0 %v415
    %1404 = vmatprep.subr.bf16.mxu0 %v420
    %1405 = vmatpush1.bf16.msra.mxu0 %v419
    %1406 = vmatprep.subr.bf16.mxu0 %v424
    %1407 = vmatpush1.bf16.msra.mxu0 %v423
    %1408 = vmatprep.subr.bf16.mxu0 %v428
    %1409 = vmatpush1.bf16.msra.mxu0 %v427
    %1410 = vmatprep.subr.bf16.mxu0 0
    %1411 = vmatpush1.bf16.msra.mxu0 0
    %1412 = vmatprep.subr.bf16.mxu0 0
    %1413 = vmatpush1.bf16.msra.mxu0 0
    %1414 = vmatprep.subr.bf16.mxu0 0
    %1415 = vmatpush1.bf16.msra.mxu0 0
    %1416 = vmatprep.subr.bf16.mxu0 0
    %1417 = vmatpush1.bf16.msra.mxu0 0
    %1418 = vmatprep.subr.bf16.mxu0 0
    %1419 = vmatpush1.bf16.msra.mxu0 0
    %1420 = vmatprep.subr.bf16.mxu0 0
    %1421 = vmatpush1.bf16.msra.mxu0 0
    %1422 = vmatprep.subr.bf16.mxu0 0
    %1423 = vmatpush1.bf16.msra.mxu0 0
    %1424 = vmatprep.subr.bf16.mxu0 0
    %1425 = vmatpush1.bf16.msra.mxu0 0
    %1426 = vmatprep.mubr.bf16.mxu0 0
    %1427 = vmatmul.mubr.bf16.gmra.mrb[0].mxu0 %v1391
    %v1428 = vpop.f32.mrb[0].mxu0
    %v1429 = vadd.f32 0.0, %v1428
    %v1430 = vpop.f32.mrb[0].mxu0
    %v1431 = vadd.f32 0.0, %v1430
    %v1432 = vpop.f32.mrb[0].mxu0
    %v1433 = vpop.f32.mrb[0].mxu0
    %1434 = vdwg.mxu0
    %1435 = vmatprep.subr.bf16.mxu0 %v402
    %1436 = vmatpush1.bf16.msra.mxu0 %v401
    %1437 = vmatprep.subr.bf16.mxu0 %v406
    %1438 = vmatpush1.bf16.msra.mxu0 %v405
    %1439 = vmatprep.subr.bf16.mxu0 %v410
    %1440 = vmatpush1.bf16.msra.mxu0 %v409
    %1441 = vmatprep.subr.bf16.mxu0 %v414
    %1442 = vmatpush1.bf16.msra.mxu0 %v413
    %1443 = vmatprep.subr.bf16.mxu0 %v418
    %1444 = vmatpush1.bf16.msra.mxu0 %v417
    %1445 = vmatprep.subr.bf16.mxu0 %v422
    %1446 = vmatpush1.bf16.msra.mxu0 %v421
    %1447 = vmatprep.subr.bf16.mxu0 %v426
    %1448 = vmatpush1.bf16.msra.mxu0 %v425
    %1449 = vmatprep.subr.bf16.mxu0 %v430
    %1450 = vmatpush1.bf16.msra.mxu0 %v429
    %1451 = vmatprep.subr.bf16.mxu0 0
    %1452 = vmatpush1.bf16.msra.mxu0 0
    %1453 = vmatprep.subr.bf16.mxu0 0
    %1454 = vmatpush1.bf16.msra.mxu0 0
    %1455 = vmatprep.subr.bf16.mxu0 0
    %1456 = vmatpush1.bf16.msra.mxu0 0
    %1457 = vmatprep.subr.bf16.mxu0 0
    %1458 = vmatpush1.bf16.msra.mxu0 0
    %1459 = vmatprep.subr.bf16.mxu0 0
    %1460 = vmatpush1.bf16.msra.mxu0 0
    %1461 = vmatprep.subr.bf16.mxu0 0
    %1462 = vmatpush1.bf16.msra.mxu0 0
    %1463 = vmatprep.subr.bf16.mxu0 0
    %1464 = vmatpush1.bf16.msra.mxu0 0
    %1465 = vmatprep.subr.bf16.mxu0 0
    %1466 = vmatpush1.bf16.msra.mxu0 0
    %1467 = vmatprep.mubr.bf16.mxu0 0
    %1468 = vmatmul.mubr.bf16.gmra.mrb[0].mxu0 %v1391
    %v1469 = vpop.f32.mrb[0].mxu0
    %v1470 = vadd.f32 0.0, %v1469
    %v1471 = vpop.f32.mrb[0].mxu0
    %v1472 = vadd.f32 0.0, %v1471
    %v1473 = vpop.f32.mrb[0].mxu0
    %v1474 = vpop.f32.mrb[0].mxu0
    %1475 = vdwg.mxu0
    %v1480 = vcombine.low %v1429, %v1431
    %v1481 = vcombine.low %v1470, %v1472
    %v1483 = vunpack.c.l.s4 1966171168
    %v1484 = vunpack.c.0.s8 %v1483
    %v1485 = vlaneseq
    %v1486 = vshrl.u32 %v1485, 7
    %v1487 = vsub.s32 %v1484, %v1486
    %v1488 = vrot.slane %v1480, %v1487
    %v1490 = vunpack.c.l.s4 1966171168
    %v1491 = vunpack.c.0.s8 %v1490
    %v1492 = vlaneseq
    %v1493 = vshrl.u32 %v1492, 7
    %v1494 = vsub.s32 %v1491, %v1493
    %v1495 = vrot.slane %v1481, %v1494
    %v1496 = vcombine.low %v1488, %v1495
    %v1498 = vunpack.c.l.s4 1966171168
    %v1499 = vunpack.c.0.s8 %v1498
    %v1500 = vlaneseq
    %v1501 = vshrl.u32 %v1500, 7
    %v1502 = vsub.s32 %v1499, %v1501
    %v1503 = vrot.slane %v1496, %v1502
    %v1505 = vadd.f32 %v1393, %v1503
    %v1506 = vmul.f32 %v1505, 0.5
    %v1507 = vtanh.pop %v1506
    %v1508 = vmul.f32 %v1507, 0.5
    %v1509 = vadd.f32 %v1508, 0.5
    %v1511 = vrot.slane %v1505, 3
    %v1513 = vtanh.pop %v1511
    %v1515 = vrot.slane %v1509, 1
    %v1517 = vmul.f32 %v1515, %v1386
    %v1518 = vmul.f32 %v1509, %v1513
    %v1519 = vadd.f32 %v1517, %v1518
    %v1520 = vtanh.pop %v1519
    %v1521 = vrot.slane %v1509, 2
    %v1523 = vmul.f32 %v1521, %v1520
    %v1525 = vlaneseq
    %v1526 = vshrl.u32 %v1525, 7
    %v1527 = vsub.s32 0, %v1526
    %v1528 = vrot.slane %v725, %v1527
    %v1531 = vlaneseq
    %v1532 = vshrl.u32 %v1531, 7
    %v1533 = vsub.s32 0, %v1532
    %v1534 = vrot.slane %v858, %v1533
    %v1537 = vlaneseq
    %v1538 = vshrl.u32 %v1537, 7
    %v1539 = vsub.s32 0, %v1538
    %v1540 = vrot.slane %v991, %v1539
    %v1543 = vlaneseq
    %v1544 = vshrl.u32 %v1543, 7
    %v1545 = vsub.s32 0, %v1544
    %v1546 = vrot.slane %v1124, %v1545
    %v1549 = vlaneseq
    %v1550 = vshrl.u32 %v1549, 7
    %v1551 = vsub.s32 0, %v1550
    %v1552 = vrot.slane %v1257, %v1551
    %v1555 = vlaneseq
    %v1556 = vshrl.u32 %v1555, 7
    %v1557 = vsub.s32 0, %v1556
    %v1558 = vrot.slane %v1390, %v1557
    %v1561 = vlaneseq
    %v1562 = vshrl.u32 %v1561, 7
    %v1563 = vsub.s32 0, %v1562
    %v1564 = vrot.slane %v1523, %v1563
    %vm1566 = vcmask 1040384
    %v1567 = vsel %vm1566, %v592, %v1528
    %vm1568 = vcmask 1041408
    %v1569 = vsel %vm1568, %v1567, %v1534
    %vm1570 = vcmask 1042432
    %v1571 = vsel %vm1570, %v1569, %v1540
    %vm1572 = vcmask 1043456
    %v1573 = vsel %vm1572, %v1571, %v1546
    %vm1574 = vcmask 1044480
    %v1575 = vsel %vm1574, %v1573, %v1552
    %vm1576 = vcmask 1045504
    %v1577 = vsel %vm1576, %v1575, %v1558
    %vm1578 = vcmask 1046528
    %v1579 = vsel %vm1578, %v1577, %v1564
    %v1580 = vpack.c.bf16 %v1579, %v1579
    %v1581 = vld [vmem:[%s6] sm:$0xf]
    %v1582 = vld [vmem:[%s6 + $0x4] sm:$0xf]
    %v1583 = vld [vmem:[%s6 + $0x8] sm:$0xf]
    %v1584 = vld [vmem:[%s6 + $0xc] sm:$0xf]
    %v1585 = vld [vmem:[%s6 + $0x10] sm:$0xf]
    %v1586 = vld [vmem:[%s6 + $0x14] sm:$0xf]
    %v1587 = vld [vmem:[%s6 + $0x18] sm:$0xf]
    %v1588 = vld [vmem:[%s6 + $0x1c] sm:$0xf]
    %v1589 = vld [vmem:[%s6 + $0x20] sm:$0xf]
    %v1590 = vld [vmem:[%s6 + $0x24] sm:$0xf]
    %v1591 = vld [vmem:[%s6 + $0x28] sm:$0xf]
    %v1592 = vld [vmem:[%s6 + $0x2c] sm:$0xf]
    %v1593 = vld [vmem:[%s6 + $0x30] sm:$0xf]
    %v1594 = vld [vmem:[%s6 + $0x34] sm:$0xf]
    %v1595 = vld [vmem:[%s6 + $0x38] sm:$0xf]
    %v1596 = vld [vmem:[%s6 + $0x3c] sm:$0xf]
    %v1597 = vld [vmem:[%s7] sm:$0x1]
    %v1599 = vlaneseq
    %v1600 = vshrl.u32 %v1599, 7
    %v1601 = vsub.s32 0, %v1600
    %v1602 = vrot.slane %v1597, %v1601
    %v1620 = vunpack.c.l.b16 %v1581
    %v1621 = vunpack.c.l.b16 %v1582
    %v1622 = vunpack.c.l.b16 %v1583
    %v1623 = vunpack.c.l.b16 %v1584
    %v1624 = vunpack.c.l.b16 %v1585
    %v1625 = vunpack.c.l.b16 %v1586
    %v1626 = vunpack.c.l.b16 %v1587
    %v1627 = vunpack.c.l.b16 %v1588
    %v1628 = vunpack.c.l.b16 %v1589
    %v1629 = vunpack.c.l.b16 %v1590
    %v1630 = vunpack.c.l.b16 %v1591
    %v1631 = vunpack.c.l.b16 %v1592
    %v1632 = vunpack.c.l.b16 %v1593
    %v1633 = vunpack.c.l.b16 %v1594
    %v1634 = vunpack.c.l.b16 %v1595
    %v1635 = vunpack.c.l.b16 %v1596
    %v1636 = vpack.c.b16 %v1621, %v1620
    %v1637 = vpack.c.b16 %v1623, %v1622
    %v1638 = vpack.c.b16 %v1625, %v1624
    %v1639 = vpack.c.b16 %v1627, %v1626
    %v1640 = vpack.c.b16 %v1629, %v1628
    %v1641 = vpack.c.b16 %v1631, %v1630
    %v1642 = vpack.c.b16 %v1633, %v1632
    %v1643 = vpack.c.b16 %v1635, %v1634
    %1652 = vmatprep.subr.bf16.mxu0 0
    %1653 = vmatpush1.bf16.msra.mxu0 %v1636
    %1654 = vmatprep.subr.bf16.mxu0 0
    %1655 = vmatpush1.bf16.msra.mxu0 %v1637
    %1656 = vmatprep.subr.bf16.mxu0 0
    %1657 = vmatpush1.bf16.msra.mxu0 %v1638
    %1658 = vmatprep.subr.bf16.mxu0 0
    %1659 = vmatpush1.bf16.msra.mxu0 %v1639
    %1660 = vmatprep.subr.bf16.mxu0 0
    %1661 = vmatpush1.bf16.msra.mxu0 %v1640
    %1662 = vmatprep.subr.bf16.mxu0 0
    %1663 = vmatpush1.bf16.msra.mxu0 %v1641
    %1664 = vmatprep.subr.bf16.mxu0 0
    %1665 = vmatpush1.bf16.msra.mxu0 %v1642
    %1666 = vmatprep.subr.bf16.mxu0 0
    %1667 = vmatpush1.bf16.msra.mxu0 %v1643
    %1668 = vmatprep.subr.bf16.mxu0 0
    %1669 = vmatpush1.bf16.msra.mxu0 0
    %1670 = vmatprep.subr.bf16.mxu0 0
    %1671 = vmatpush1.bf16.msra.mxu0 0
    %1672 = vmatprep.subr.bf16.mxu0 0
    %1673 = vmatpush1.bf16.msra.mxu0 0
    %1674 = vmatprep.subr.bf16.mxu0 0
    %1675 = vmatpush1.bf16.msra.mxu0 0
    %1676 = vmatprep.subr.bf16.mxu0 0
    %1677 = vmatpush1.bf16.msra.mxu0 0
    %1678 = vmatprep.subr.bf16.mxu0 0
    %1679 = vmatpush1.bf16.msra.mxu0 0
    %1680 = vmatprep.subr.bf16.mxu0 0
    %1681 = vmatpush1.bf16.msra.mxu0 0
    %1682 = vmatprep.subr.bf16.mxu0 0
    %1683 = vmatpush1.bf16.msra.mxu0 0
    %1684 = vmatprep.mubr.bf16.mxu0 0
    %1685 = vmatmul.mubr.bf16.gmra.mrb[0].mxu0 %v1580
    %v1686 = vpop.f32.mrb[0].mxu0
    %v1687 = vadd.f32 %v1602, %v1686
    %v1688 = vpop.f32.mrb[0].mxu0
    %v1689 = vpop.f32.mrb[0].mxu0
    %v1690 = vpop.f32.mrb[0].mxu0
    %1691 = vdwg.mxu0
    %1692 = vst [vmem:[%s8] sm:$0xff] %v1687
    // Predicated region
    $region42: #{rnng_forward.1} parent=1 // pred_check
      _
    $region43: #{rnng_forward.1} parent=1 // pred_check_branch
      %1694 = sbr.rel (0) target = $region45
    $region44: #{rnng_forward.1} parent=1 // pred_region
      _
    $region45: #{rnng_forward.1} parent=1 // pred_fallthru
      _
    // Predicated region
    $region46: #{rnng_forward.1} parent=1 // pred_check
      _
    $region47: #{rnng_forward.1} parent=1 // pred_check_branch
      %1696 = sbr.rel (0) target = $region49
    $region48: #{rnng_forward.1} parent=1 // pred_region
      _
    $region49: #{rnng_forward.1} parent=1 // pred_fallthru
      _
    %1697 = vsyncpa [#allocation4], 1
    %1698 = vsyncpa [#allocation6], 1

</llo_original>
